<compile_context>
chip_gen: v7x
topology: tpu7x:2x2x1
jax: 0.10.0
libtpu: 0.0.40
codegen_flags: <defaults>
</compile_context>

<pallas_src>
import functools
import math

import jax
import jax.numpy as jnp
from jax import lax
from jax.experimental import pallas as pl
from jax.experimental.pallas import tpu as pltpu

LN_EPS = 1e-5
_NEG_INF = -1e30  # causal-mask fill (f32-safe)


# ------------------------------ small helpers -------------------------------

def _layernorm_f32(x, g, b, eps=LN_EPS):
    mu = jnp.mean(x, axis=-1, keepdims=True)
    var = jnp.mean(jnp.square(x - mu), axis=-1, keepdims=True)
    return (x - mu) * lax.rsqrt(var + eps) * g + b


def _gelu_exact(x):
    # Exact erf GELU — matches PyTorch nn.GELU() default (not the tanh approx).
    return 0.5 * x * (1.0 + lax.erf(x * 0.7071067811865476))


def _row_tile(M, target=512):
    """Largest row tile <= target dividing M, preferring 16/8-sublane multiples."""
    if M <= target:
        return M
    for step in (16, 8):
        t = (min(target, M) // step) * step
        while t >= step:
            if M % t == 0:
                return t
            t -= step
    return M


def _vmem_cap_bytes():
    """3/4 of per-core VMEM; falls back to a v7x-safe 48 MiB if the query fails."""
    phys = 0
    try:
        info = pltpu.get_tpu_info()
        phys = int(getattr(info, "vmem_capacity_bytes", 0) or 0)
    except Exception:
        phys = 0
    if phys <= 0:
        phys = 64 << 20
    return (phys // 4) * 3


_VMEM_CAP_BYTES = _vmem_cap_bytes()


def _mosaic_params(n_grid_axes, block_bytes, temp_bytes=0):
    """Compiler params: parallel grid axes + scoped-VMEM limit from per-block bytes
    (double-buffered) + in-kernel temporary estimate + headroom, capped to 3/4 of
    physical per-core VMEM (v7x-safe)."""
    vmem = int(2 * block_bytes + temp_bytes + (6 << 20))
    vmem = int(min(max(vmem, 16 << 20), _VMEM_CAP_BYTES))
    return pltpu.CompilerParams(
        dimension_semantics=("parallel",) * n_grid_axes,
        vmem_limit_bytes=vmem)


# ----------------------------- Pallas kernels ------------------------------

def _embed_kernel(zs_ref, w_ref, b_ref, wpe_ref, o_ref):
    # read_in linear + learned positional embedding, one batch element per step.
    z = zs_ref[0].astype(jnp.bfloat16)                               # [T, d]
    y = jnp.dot(z, w_ref[...], preferred_element_type=jnp.float32)
    y = y + b_ref[...].astype(jnp.float32) + wpe_ref[...].astype(jnp.float32)
    o_ref[0] = y.astype(o_ref.dtype)


def _layer_kernel(h_ref, g1_ref, b1_ref, wqkv_ref, bqkv_ref, wpr_ref, bpr_ref,
                  g2_ref, b2_ref, wfc_ref, bfc_ref, wmp_ref, bmp_ref, o_ref,
                  *, n_head, d_head):
    # Fused transformer layer for one batch element:
    #   LN1 -> per-head QKV -> causal softmax -> PV -> out-proj -> residual
    #   -> LN2 -> fc -> exact GELU -> proj -> residual.
    h = h_ref[0].astype(jnp.float32)                                 # [T, E]
    T, E = h.shape
    dhp = wqkv_ref.shape[2] // 3                                     # padded head dim (>=128)
    scale = 1.0 / math.sqrt(d_head)

    # ---- attention sub-block ----
    x = _layernorm_f32(h, g1_ref[...].astype(jnp.float32),
                       b1_ref[...].astype(jnp.float32))
    x16 = x.astype(jnp.bfloat16)

    row = lax.broadcasted_iota(jnp.int32, (T, T), 0)
    col = lax.broadcasted_iota(jnp.int32, (T, T), 1)
    causal = col <= row

    def head_body(hh, acc):
        # Head-major padded weight slabs: dynamic index on the LEADING ref axis only.
        qkv = jnp.dot(x16, wqkv_ref[hh], preferred_element_type=jnp.float32)
        qkv = qkv + bqkv_ref[hh].astype(jnp.float32)                 # [T, 3*dhp]
        q = qkv[:, 0 * dhp:1 * dhp].astype(jnp.bfloat16)             # 128-aligned static slices
        k = qkv[:, 1 * dhp:2 * dhp].astype(jnp.bfloat16)
        v = qkv[:, 2 * dhp:3 * dhp].astype(jnp.bfloat16)
        s = lax.dot_general(q, k, (((1,), (1,)), ((), ())),
                            preferred_element_type=jnp.float32) * scale
        s = jnp.where(causal, s, _NEG_INF)
        s = s - jnp.max(s, axis=-1, keepdims=True)
        p = jnp.exp(s)
        p = p * pl.reciprocal(jnp.sum(p, axis=-1, keepdims=True), approx=True)
        ctx = jnp.dot(p.astype(jnp.bfloat16), v,
                      preferred_element_type=jnp.float32)            # [T, dhp]
        # fold the per-head output projection directly into the accumulator
        return acc + jnp.dot(ctx.astype(jnp.bfloat16), wpr_ref[hh],
                             preferred_element_type=jnp.float32)

    attn = lax.fori_loop(0, n_head, head_body, jnp.zeros((T, E), jnp.float32))
    h1 = h + attn + bpr_ref[...].astype(jnp.float32)                 # residual (f32)

    # ---- MLP sub-block ----
    x2 = _layernorm_f32(h1, g2_ref[...].astype(jnp.float32),
                        b2_ref[...].astype(jnp.float32))
    hid = jnp.dot(x2.astype(jnp.bfloat16), wfc_ref[...],
                  preferred_element_type=jnp.float32)
    hid = _gelu_exact(hid + bfc_ref[...].astype(jnp.float32))        # f32 VPU/EUP
    mlp = jnp.dot(hid.astype(jnp.bfloat16), wmp_ref[...],
                  preferred_element_type=jnp.float32)
    o_ref[0] = (h1 + mlp + bmp_ref[...].astype(jnp.float32)).astype(o_ref.dtype)


def _final_kernel(h_ref, g_ref, b_ref, w_ref, bias_ref, o_ref):
    # Fused final LN + read_out.  read_out weight is pre-padded to 128 output lanes
    # so the store is lane-dense / unmasked; column 0 carries the prediction.
    h = h_ref[...].astype(jnp.float32)
    x = _layernorm_f32(h, g_ref[...].astype(jnp.float32),
                       b_ref[...].astype(jnp.float32))
    y = jnp.dot(x.astype(jnp.bfloat16), w_ref[...],
                preferred_element_type=jnp.float32)
    o_ref[...] = (y + bias_ref[...].astype(jnp.float32)).astype(o_ref.dtype)


# --------------------------- pallas_call wrappers ----------------------------

def pallas_read_in(zs, w_bf16, b, wpe_t):
    B, T, d = zs.shape
    E = w_bf16.shape[1]
    args = (zs, w_bf16, b, wpe_t)
    block_bytes = (T * d * 4 + d * E * 2 + E * 4 + T * E * 4 + T * E * 2)
    return pl.pallas_call(
        _embed_kernel,
        grid=(B,),
        in_specs=[
            pl.BlockSpec((1, T, d), lambda i: (i, 0, 0)),
            pl.BlockSpec((d, E), lambda i: (0, 0)),
            pl.BlockSpec((1, E), lambda i: (0, 0)),
            pl.BlockSpec((T, E), lambda i: (0, 0)),
        ],
        out_specs=pl.BlockSpec((1, T, E), lambda i: (i, 0, 0)),
        out_shape=jax.ShapeDtypeStruct((B, T, E), jnp.bfloat16),
        compiler_params=_mosaic_params(1, block_bytes, 4 * T * E * 4),
    )(*args)


def pallas_layer(h, blk, *, n_head):
    B, T, E = h.shape
    DhP = blk["wqkv"].shape[2] // 3
    Dh = E // n_head
    H = blk["wfc"].shape[1]
    args = (h, blk["ln1_g"], blk["ln1_b"], blk["wqkv"], blk["bqkv"], blk["wproj"],
            blk["bproj"], blk["ln2_g"], blk["ln2_b"], blk["wfc"], blk["bfc"],
            blk["wmp"], blk["bmp"])
    in_specs = [
        pl.BlockSpec((1, T, E), lambda i: (i, 0, 0)),
        pl.BlockSpec((1, E), lambda i: (0, 0)),
        pl.BlockSpec((1, E), lambda i: (0, 0)),
        pl.BlockSpec((n_head, E, 3 * DhP), lambda i: (0, 0, 0)),
        pl.BlockSpec((n_head, 1, 3 * DhP), lambda i: (0, 0, 0)),
        pl.BlockSpec((n_head, DhP, E), lambda i: (0, 0, 0)),
        pl.BlockSpec((1, E), lambda i: (0, 0)),
        pl.BlockSpec((1, E), lambda i: (0, 0)),
        pl.BlockSpec((1, E), lambda i: (0, 0)),
        pl.BlockSpec((E, H), lambda i: (0, 0)),
        pl.BlockSpec((1, H), lambda i: (0, 0)),
        pl.BlockSpec((H, E), lambda i: (0, 0)),
        pl.BlockSpec((1, E), lambda i: (0, 0)),
    ]
    block_bytes = (2 * T * E * 2                                     # h in + out (bf16)
                   + sum(int(a.size) * a.dtype.itemsize for a in args[1:]))
    # rough f32 temporary footprint inside the body (per-head bounded by fori_loop)
    temp = 4 * (T * 3 * DhP + 2 * T * T + T * DhP + T * H + 6 * T * E)
    return pl.pallas_call(
        functools.partial(_layer_kernel, n_head=n_head, d_head=Dh),
        grid=(B,),
        in_specs=in_specs,
        out_specs=pl.BlockSpec((1, T, E), lambda i: (i, 0, 0)),
        out_shape=jax.ShapeDtypeStruct((B, T, E), jnp.bfloat16),
        compiler_params=_mosaic_params(1, block_bytes, temp),
    )(*args)


def pallas_final_readout(h2d, g, b, w_pad_bf16, b_pad):
    M, E = h2d.shape
    NP = w_pad_bf16.shape[1]
    tm = _row_tile(M)
    args = (h2d, g, b, w_pad_bf16, b_pad)
    block_bytes = (tm * E * 2 + 2 * E * 4 + E * NP * 2 + NP * 4 + tm * NP * 4)
    return pl.pallas_call(
        _final_kernel,
        grid=(M // tm,),
        in_specs=[
            pl.BlockSpec((tm, E), lambda i: (i, 0)),
            pl.BlockSpec((1, E), lambda i: (0, 0)),
            pl.BlockSpec((1, E), lambda i: (0, 0)),
            pl.BlockSpec((E, NP), lambda i: (0, 0)),
            pl.BlockSpec((1, NP), lambda i: (0, 0)),
        ],
        out_specs=pl.BlockSpec((tm, NP), lambda i: (i, 0)),
        out_shape=jax.ShapeDtypeStruct((M, NP), jnp.float32),
        compiler_params=_mosaic_params(1, block_bytes, 4 * tm * (E + NP) * 4),
    )(*args)


# ------------------------- Parameters & preparation --------------------------

def init_params(key, n_dims, n_positions, n_embd, n_layer, n_head, freq=2):
    block_size = freq * n_positions + 1
    std = 0.02

    def normal(k, shape):
        return std * jax.random.normal(k, shape, dtype=jnp.float32)

    k_in, k_pe, k_out = jax.random.split(key, 3)
    params = {
        "read_in_w": normal(k_in, (n_dims, n_embd)),
        "read_in_b": jnp.zeros((n_embd,), jnp.float32),
        "wpe": normal(k_pe, (block_size, n_embd)),
        "read_out_w": normal(k_out, (n_embd, 1)),
        "read_out_b": jnp.zeros((1,), jnp.float32),
        "ln_f_g": jnp.ones((n_embd,), jnp.float32),
        "ln_f_b": jnp.zeros((n_embd,), jnp.float32),
        "blocks": [],
    }
    for layer in range(n_layer):
        bk = jax.random.split(jax.random.fold_in(key, 100 + layer), 4)
        params["blocks"].append({
            "ln1_g": jnp.ones((n_embd,), jnp.float32),
            "ln1_b": jnp.zeros((n_embd,), jnp.float32),
            "attn_w": normal(bk[0], (n_embd, 3 * n_embd)),
            "attn_b": jnp.zeros((3 * n_embd,), jnp.float32),
            "proj_w": normal(bk[1], (n_embd, n_embd)),
            "proj_b": jnp.zeros((n_embd,), jnp.float32),
            "ln2_g": jnp.ones((n_embd,), jnp.float32),
            "ln2_b": jnp.zeros((n_embd,), jnp.float32),
            "fc_w": normal(bk[2], (n_embd, 4 * n_embd)),
            "fc_b": jnp.zeros((4 * n_embd,), jnp.float32),
            "mlp_proj_w": normal(bk[3], (4 * n_embd, n_embd)),
            "mlp_proj_b": jnp.zeros((n_embd,), jnp.float32),
        })
    return params


def prepare_params(params, n_head):
    """One-time prep: bf16 weight casts, head-major padded QKV / out-proj layouts
    (head dim zero-padded to a 128-lane slab), 128-lane-padded read_out."""
    bf16 = jnp.bfloat16
    E = params["read_in_w"].shape[1]
    Dh = E // n_head
    DhP = ((Dh + 127) // 128) * 128                                  # padded head slab

    prep = {
        "read_in_w": params["read_in_w"].astype(bf16),
        "read_in_b": params["read_in_b"].reshape(1, E),
        "wpe": params["wpe"],
        "ln_f_g": params["ln_f_g"].reshape(1, E),
        "ln_f_b": params["ln_f_b"].reshape(1, E),
        "read_out_w": jnp.pad(params["read_out_w"], ((0, 0), (0, 127))).astype(bf16),
        "read_out_b": jnp.pad(params["read_out_b"], (0, 127)).reshape(1, 128),
        "blocks": [],
    }
    for blk in params["blocks"]:
        # QKV weight [E, 3E] -> head-major padded [n_head, E, 3*DhP]
        wqkv = blk["attn_w"].reshape(E, 3, n_head, Dh)
        wqkv = jnp.pad(wqkv, ((0, 0), (0, 0), (0, 0), (0, DhP - Dh)))
        wqkv = jnp.transpose(wqkv, (2, 0, 1, 3)).reshape(n_head, E, 3 * DhP)
        bqkv = blk["attn_b"].reshape(3, n_head, Dh)
        bqkv = jnp.pad(bqkv, ((0, 0), (0, 0), (0, DhP - Dh)))
        bqkv = jnp.transpose(bqkv, (1, 0, 2)).reshape(n_head, 1, 3 * DhP)
        # out-proj weight [E, E] -> head-major padded [n_head, DhP, E]
        wpr = blk["proj_w"].reshape(n_head, Dh, E)
        wpr = jnp.pad(wpr, ((0, 0), (0, DhP - Dh), (0, 0)))
        prep["blocks"].append({
            "ln1_g": blk["ln1_g"].reshape(1, E), "ln1_b": blk["ln1_b"].reshape(1, E),
            "wqkv": wqkv.astype(bf16), "bqkv": bqkv,
            "wproj": wpr.astype(bf16), "bproj": blk["proj_b"].reshape(1, E),
            "ln2_g": blk["ln2_g"].reshape(1, E), "ln2_b": blk["ln2_b"].reshape(1, E),
            "wfc": blk["fc_w"].astype(bf16), "bfc": blk["fc_b"].reshape(1, 4 * E),
            "wmp": blk["mlp_proj_w"].astype(bf16), "bmp": blk["mlp_proj_b"].reshape(1, E),
        })
    return prep


# --------------------------------- forward -----------------------------------

def transformer_forward(prep, xs, ys, *, n_head, freq=2, ind=0):
    """xs: [B, n, d], ys: [B, n] -> (w: [B, n], embeds_list)."""
    B, n, d = xs.shape
    E = prep["read_in_w"].shape[1]
    T = freq * n

    # _combine: interleave x_i with (y_i, 0, ..., 0) along the sequence axis.
    ys_wide = jnp.concatenate(
        [ys[..., None], jnp.zeros((B, n, d - 1), xs.dtype)], axis=2)
    zs = jnp.stack([xs, ys_wide], axis=2).reshape(B, T, d)

    # read_in + learned positional embedding (fused kernel), bf16 residual stream.
    h = pallas_read_in(zs, prep["read_in_w"], prep["read_in_b"], prep["wpe"][:T])

    # TODO(synk): exact contents of `embeds_list` under output_intermediate=True
    # depend on the custom GPT2Model; we collect post-pos-embed input plus each
    # block's output (carried in bf16).
    embeds_list = [h]

    for blk in prep["blocks"]:
        h = pallas_layer(h, blk, n_head=n_head)       # fused attn + MLP per layer
        embeds_list.append(h)

    # final LN + read_out fused; prediction lives in column 0 of the padded lanes.
    pred = pallas_final_readout(h.reshape(B * T, E), prep["ln_f_g"],
                                prep["ln_f_b"], prep["read_out_w"],
                                prep["read_out_b"])
    pred = pred[:, 0].reshape(B, T)

    # w = prediction[:, ind::freq, 0] -> predictions at the x_i positions
    w = pred[:, ind::freq]
    return w, embeds_list


# ----------------------------------- main ------------------------------------

if __name__ == "__main__":
    # Small shapes consistent with the module's forward.
    n_dims, n_positions, n_embd, n_layer, n_head = 4, 8, 32, 2, 4
    B = 2

    key = jax.random.PRNGKey(0)
    k_param, k_x, k_y = jax.random.split(key, 3)

    params = init_params(k_param, n_dims, n_positions, n_embd, n_layer, n_head)
    prep = prepare_params(params, n_head)   # one-time bf16 cast + padded layouts
    xs = jax.random.normal(k_x, (B, n_positions, n_dims), dtype=jnp.float32)
    ys = jax.random.normal(k_y, (B, n_positions), dtype=jnp.float32)

    fwd = jax.jit(functools.partial(transformer_forward, n_head=n_head))
    w, embeds_list = fwd(prep, xs, ys)
    jax.block_until_ready(w)
    jax.block_until_ready(embeds_list)

    assert w.shape == (B, n_positions), w.shape
    assert len(embeds_list) == n_layer + 1
    print("KERNEL_OK")
</pallas_src>

<mosaic_0001>
module attributes {stable_mosaic.version = 11 : i64} {
  func.func @_embed_kernel(%arg0: i32, %arg1: memref<1x16x4xf32, #tpu.memory_space<vmem>>, %arg2: memref<4x32xbf16, #tpu.memory_space<vmem>>, %arg3: memref<1x32xf32, #tpu.memory_space<vmem>>, %arg4: memref<16x32xf32, #tpu.memory_space<vmem>>, %arg5: memref<1x16x32xbf16, #tpu.memory_space<vmem>>) attributes {dimension_semantics = [#tpu.dimension_semantics<parallel>], iteration_bounds = array<i64: 2>, scalar_prefetch = 0 : i64, scratch_operands = 0 : i64, tpu.core_type = #tpu.core_type<tc>, window_params = [{transform_indices = @transform_0, window_bounds = array<i64: 1, 16, 4>}, {pipeline_mode = #tpu.pipeline_mode<synchronous>, transform_indices = @transform_1, window_bounds = array<i64: 4, 32>}, {pipeline_mode = #tpu.pipeline_mode<synchronous>, transform_indices = @transform_2, window_bounds = array<i64: 1, 32>}, {pipeline_mode = #tpu.pipeline_mode<synchronous>, transform_indices = @transform_3, window_bounds = array<i64: 16, 32>}, {transform_indices = @transform_4, window_bounds = array<i64: 1, 16, 32>}]} {
    %c0 = arith.constant 0 : index
    %c0_0 = arith.constant 0 : index
    %c0_1 = arith.constant 0 : index
    %0 = vector.load %arg1[%c0, %c0_0, %c0_1] : memref<1x16x4xf32, #tpu.memory_space<vmem>>, vector<1x16x4xf32>
    %1 = vector.shape_cast %0 : vector<1x16x4xf32> to vector<16x4xf32>
    %2 = arith.truncf %1 : vector<16x4xf32> to vector<16x4xbf16>
    %c0_2 = arith.constant 0 : index
    %c0_3 = arith.constant 0 : index
    %3 = vector.load %arg2[%c0_2, %c0_3] : memref<4x32xbf16, #tpu.memory_space<vmem>>, vector<4x32xbf16>
    %cst = arith.constant dense<0.000000e+00> : vector<16x32xf32>
    %4 = tpu.matmul %2, %3, %cst {dimension_numbers = #tpu.dot_dimension_numbers<[1], [0], [0], [1], [0, 0, 1, 1], [], []>} : vector<16x4xbf16>, vector<4x32xbf16>, vector<16x32xf32> -> vector<16x32xf32>
    %c0_4 = arith.constant 0 : index
    %c0_5 = arith.constant 0 : index
    %5 = vector.load %arg3[%c0_4, %c0_5] : memref<1x32xf32, #tpu.memory_space<vmem>>, vector<1x32xf32>
    %6 = vector.broadcast %5 : vector<1x32xf32> to vector<16x32xf32>
    %7 = arith.addf %4, %6 : vector<16x32xf32>
    %c0_6 = arith.constant 0 : index
    %c0_7 = arith.constant 0 : index
    %8 = vector.load %arg4[%c0_6, %c0_7] : memref<16x32xf32, #tpu.memory_space<vmem>>, vector<16x32xf32>
    %9 = arith.addf %7, %8 : vector<16x32xf32>
    %10 = arith.truncf %9 : vector<16x32xf32> to vector<16x32xbf16>
    %c0_8 = arith.constant 0 : index
    %c0_9 = arith.constant 0 : index
    %c0_10 = arith.constant 0 : index
    %11 = vector.load %arg5[%c0_8, %c0_9, %c0_10] : memref<1x16x32xbf16, #tpu.memory_space<vmem>>, vector<1x16x32xbf16>
    %12 = vector.shape_cast %11 : vector<1x16x32xbf16> to vector<16x32xbf16>
    %13 = vector.shape_cast %10 : vector<16x32xbf16> to vector<1x16x32xbf16>
    tpu.vector_store %arg5[%c0_8, %c0_9, %c0_10], %13 {strides = array<i32>} : memref<1x16x32xbf16, #tpu.memory_space<vmem>>, vector<1x16x32xbf16>,
    return
  }
  func.func @transform_0(%arg0: i32) -> (i32, i32, i32) {
    %c0_i32 = arith.constant 0 : i32
    %c0_i32_0 = arith.constant 0 : i32
    %c0_i32_1 = arith.constant 0 : i32
    return %arg0, %c0_i32, %c0_i32_0 : i32, i32, i32
  }
  func.func @transform_1(%arg0: i32) -> (i32, i32) {
    %c0_i32 = arith.constant 0 : i32
    %c0_i32_0 = arith.constant 0 : i32
    %c0_i32_1 = arith.constant 0 : i32
    return %c0_i32, %c0_i32_0 : i32, i32
  }
  func.func @transform_2(%arg0: i32) -> (i32, i32) {
    %c0_i32 = arith.constant 0 : i32
    %c0_i32_0 = arith.constant 0 : i32
    %c0_i32_1 = arith.constant 0 : i32
    return %c0_i32, %c0_i32_0 : i32, i32
  }
  func.func @transform_3(%arg0: i32) -> (i32, i32) {
    %c0_i32 = arith.constant 0 : i32
    %c0_i32_0 = arith.constant 0 : i32
    %c0_i32_1 = arith.constant 0 : i32
    return %c0_i32, %c0_i32_0 : i32, i32
  }
  func.func @transform_4(%arg0: i32) -> (i32, i32, i32) {
    %c0_i32 = arith.constant 0 : i32
    %c0_i32_0 = arith.constant 0 : i32
    %c0_i32_1 = arith.constant 0 : i32
    return %arg0, %c0_i32, %c0_i32_0 : i32, i32, i32
  }
}

module attributes {stable_mosaic.version = 11 : i64} {
  func.func @_layer_kernel(%arg0: i32, %arg1: memref<1x16x32xbf16, #tpu.memory_space<vmem>>, %arg2: memref<1x32xf32, #tpu.memory_space<vmem>>, %arg3: memref<1x32xf32, #tpu.memory_space<vmem>>, %arg4: memref<4x32x384xbf16, #tpu.memory_space<vmem>>, %arg5: memref<4x1x384xf32, #tpu.memory_space<vmem>>, %arg6: memref<4x128x32xbf16, #tpu.memory_space<vmem>>, %arg7: memref<1x32xf32, #tpu.memory_space<vmem>>, %arg8: memref<1x32xf32, #tpu.memory_space<vmem>>, %arg9: memref<1x32xf32, #tpu.memory_space<vmem>>, %arg10: memref<32x128xbf16, #tpu.memory_space<vmem>>, %arg11: memref<1x128xf32, #tpu.memory_space<vmem>>, %arg12: memref<128x32xbf16, #tpu.memory_space<vmem>>, %arg13: memref<1x32xf32, #tpu.memory_space<vmem>>, %arg14: memref<1x16x32xbf16, #tpu.memory_space<vmem>>) attributes {dimension_semantics = [#tpu.dimension_semantics<parallel>], iteration_bounds = array<i64: 2>, scalar_prefetch = 0 : i64, scratch_operands = 0 : i64, tpu.core_type = #tpu.core_type<tc>, window_params = [{transform_indices = @transform_0, window_bounds = array<i64: 1, 16, 32>}, {pipeline_mode = #tpu.pipeline_mode<synchronous>, transform_indices = @transform_1, window_bounds = array<i64: 1, 32>}, {pipeline_mode = #tpu.pipeline_mode<synchronous>, transform_indices = @transform_2, window_bounds = array<i64: 1, 32>}, {pipeline_mode = #tpu.pipeline_mode<synchronous>, transform_indices = @transform_3, window_bounds = array<i64: 4, 32, 384>}, {pipeline_mode = #tpu.pipeline_mode<synchronous>, transform_indices = @transform_4, window_bounds = array<i64: 4, 1, 384>}, {pipeline_mode = #tpu.pipeline_mode<synchronous>, transform_indices = @transform_5, window_bounds = array<i64: 4, 128, 32>}, {pipeline_mode = #tpu.pipeline_mode<synchronous>, transform_indices = @transform_6, window_bounds = array<i64: 1, 32>}, {pipeline_mode = #tpu.pipeline_mode<synchronous>, transform_indices = @transform_7, window_bounds = array<i64: 1, 32>}, {pipeline_mode = #tpu.pipeline_mode<synchronous>, transform_indices = @transform_8, window_bounds = array<i64: 1, 32>}, {pipeline_mode = #tpu.pipeline_mode<synchronous>, transform_indices = @transform_9, window_bounds = array<i64: 32, 128>}, {pipeline_mode = #tpu.pipeline_mode<synchronous>, transform_indices = @transform_10, window_bounds = array<i64: 1, 128>}, {pipeline_mode = #tpu.pipeline_mode<synchronous>, transform_indices = @transform_11, window_bounds = array<i64: 128, 32>}, {pipeline_mode = #tpu.pipeline_mode<synchronous>, transform_indices = @transform_12, window_bounds = array<i64: 1, 32>}, {transform_indices = @transform_13, window_bounds = array<i64: 1, 16, 32>}]} {
    %c0 = arith.constant 0 : index
    %c0_0 = arith.constant 0 : index
    %c0_1 = arith.constant 0 : index
    %0 = vector.load %arg1[%c0, %c0_0, %c0_1] : memref<1x16x32xbf16, #tpu.memory_space<vmem>>, vector<1x16x32xbf16>
    %1 = vector.shape_cast %0 : vector<1x16x32xbf16> to vector<16x32xbf16>
    %2 = arith.extf %1 : vector<16x32xbf16> to vector<16x32xf32>
    %c0_2 = arith.constant 0 : index
    %c0_3 = arith.constant 0 : index
    %3 = vector.load %arg2[%c0_2, %c0_3] : memref<1x32xf32, #tpu.memory_space<vmem>>, vector<1x32xf32>
    %c0_4 = arith.constant 0 : index
    %c0_5 = arith.constant 0 : index
    %4 = vector.load %arg3[%c0_4, %c0_5] : memref<1x32xf32, #tpu.memory_space<vmem>>, vector<1x32xf32>
    %cst = arith.constant dense<0.000000e+00> : vector<16xf32>
    %5 = vector.multi_reduction <add>, %2, %cst [1] : vector<16x32xf32> to vector<16xf32>
    %6 = vector.shape_cast %5 : vector<16xf32> to vector<16x1xf32>
    %cst_6 = arith.constant 3.200000e+01 : f32
    %7 = vector.broadcast %cst_6 : f32 to vector<16x1xf32>
    %8 = arith.divf %6, %7 : vector<16x1xf32>
    %9 = vector.broadcast %8 : vector<16x1xf32> to vector<16x32xf32>
    %10 = arith.subf %2, %9 : vector<16x32xf32>
    %11 = arith.mulf %10, %10 : vector<16x32xf32>
    %cst_7 = arith.constant dense<0.000000e+00> : vector<16xf32>
    %12 = vector.multi_reduction <add>, %11, %cst_7 [1] : vector<16x32xf32> to vector<16xf32>
    %13 = vector.shape_cast %12 : vector<16xf32> to vector<16x1xf32>
    %cst_8 = arith.constant 3.200000e+01 : f32
    %14 = vector.broadcast %cst_8 : f32 to vector<16x1xf32>
    %15 = arith.divf %13, %14 : vector<16x1xf32>
    %16 = vector.broadcast %8 : vector<16x1xf32> to vector<16x32xf32>
    %17 = arith.subf %2, %16 : vector<16x32xf32>
    %cst_9 = arith.constant 9.99999974E-6 : f32
    %18 = vector.broadcast %cst_9 : f32 to vector<16x1xf32>
    %19 = arith.addf %15, %18 : vector<16x1xf32>
    %20 = math.rsqrt %19 : vector<16x1xf32>
    %21 = vector.broadcast %20 : vector<16x1xf32> to vector<16x32xf32>
    %22 = arith.mulf %17, %21 : vector<16x32xf32>
    %23 = vector.broadcast %3 : vector<1x32xf32> to vector<16x32xf32>
    %24 = arith.mulf %22, %23 : vector<16x32xf32>
    %25 = vector.broadcast %4 : vector<1x32xf32> to vector<16x32xf32>
    %26 = arith.addf %24, %25 : vector<16x32xf32>
    %27 = arith.truncf %26 : vector<16x32xf32> to vector<16x32xbf16>
    %28 = tpu.iota {dimensions = array<i32: 0>} : vector<16x16xi32>
    %29 = tpu.iota {dimensions = array<i32: 1>} : vector<16x16xi32>
    %30 = arith.cmpi sle, %29, %28 : vector<16x16xi32>
    %cst_10 = arith.constant 0.000000e+00 : f32
    %31 = vector.broadcast %cst_10 : f32 to vector<16x32xf32>
    %c0_i32 = arith.constant 0 : i32
    %c4_i32 = arith.constant 4 : i32
    %32 = arith.addi %c0_i32, %c4_i32 : i32
    %c1_i32 = arith.constant 1 : i32
    %33 = scf.for %arg15 = %c0_i32 to %32 step %c1_i32 iter_args(%arg16 = %31) -> (vector<16x32xf32>)  : i32 {
      %87 = arith.index_cast %arg15 : i32 to index
      %c0_39 = arith.constant 0 : index
      %c0_40 = arith.constant 0 : index
      %88 = vector.load %arg4[%87, %c0_39, %c0_40] : memref<4x32x384xbf16, #tpu.memory_space<vmem>>, vector<1x32x384xbf16>
      %89 = vector.shape_cast %88 : vector<1x32x384xbf16> to vector<32x384xbf16>
      %cst_41 = arith.constant dense<0.000000e+00> : vector<16x384xf32>
      %90 = tpu.matmul %27, %89, %cst_41 {dimension_numbers = #tpu.dot_dimension_numbers<[1], [0], [0], [1], [0, 0, 1, 1], [], []>} : vector<16x32xbf16>, vector<32x384xbf16>, vector<16x384xf32> -> vector<16x384xf32>
      %91 = arith.index_cast %arg15 : i32 to index
      %c0_42 = arith.constant 0 : index
      %c0_43 = arith.constant 0 : index
      %92 = vector.load %arg5[%91, %c0_42, %c0_43] : memref<4x1x384xf32, #tpu.memory_space<vmem>>, vector<1x1x384xf32>
      %93 = vector.shape_cast %92 : vector<1x1x384xf32> to vector<1x384xf32>
      %94 = vector.broadcast %93 : vector<1x384xf32> to vector<16x384xf32>
      %95 = arith.addf %90, %94 : vector<16x384xf32>
      %96 = vector.extract_strided_slice %95 {offsets = [0, 0], sizes = [16, 128], strides = [1, 1]} : vector<16x384xf32> to vector<16x128xf32>
      %97 = arith.truncf %96 : vector<16x128xf32> to vector<16x128xbf16>
      %98 = vector.extract_strided_slice %95 {offsets = [0, 128], sizes = [16, 128], strides = [1, 1]} : vector<16x384xf32> to vector<16x128xf32>
      %99 = arith.truncf %98 : vector<16x128xf32> to vector<16x128xbf16>
      %100 = vector.extract_strided_slice %95 {offsets = [0, 256], sizes = [16, 128], strides = [1, 1]} : vector<16x384xf32> to vector<16x128xf32>
      %101 = arith.truncf %100 : vector<16x128xf32> to vector<16x128xbf16>
      %cst_44 = arith.constant dense<0.000000e+00> : vector<16x16xf32>
      %102 = tpu.matmul %97, %99, %cst_44 {dimension_numbers = #tpu.dot_dimension_numbers<[1], [1], [0], [0], [0, 0, 1, 0], [], []>} : vector<16x128xbf16>, vector<16x128xbf16>, vector<16x16xf32> -> vector<16x16xf32>
      %cst_45 = arith.constant 0.353553385 : f32
      %103 = vector.broadcast %cst_45 : f32 to vector<16x16xf32>
      %104 = arith.mulf %102, %103 : vector<16x16xf32>
      %cst_46 = arith.constant -1.000000e+30 : f32
      %105 = vector.broadcast %cst_46 : f32 to vector<16x16xf32>
      %106 = arith.select %30, %104, %105 : vector<16x16xi1>, vector<16x16xf32>
      %cst_47 = arith.constant dense<0xFF800000> : vector<16xf32>
      %107 = vector.multi_reduction <maximumf>, %106, %cst_47 [1] : vector<16x16xf32> to vector<16xf32>
      %108 = vector.shape_cast %107 : vector<16xf32> to vector<16x1xf32>
      %109 = vector.broadcast %108 : vector<16x1xf32> to vector<16x16xf32>
      %110 = arith.subf %106, %109 : vector<16x16xf32>
      %111 = math.exp %110 : vector<16x16xf32>
      %cst_48 = arith.constant dense<0.000000e+00> : vector<16xf32>
      %112 = vector.multi_reduction <add>, %111, %cst_48 [1] : vector<16x16xf32> to vector<16xf32>
      %113 = vector.shape_cast %112 : vector<16xf32> to vector<16x1xf32>
      %114 = tpu.reciprocal %113 {approx = true} : vector<16x1xf32> -> vector<16x1xf32>
      %115 = vector.broadcast %114 : vector<16x1xf32> to vector<16x16xf32>
      %116 = arith.mulf %111, %115 : vector<16x16xf32>
      %117 = arith.truncf %116 : vector<16x16xf32> to vector<16x16xbf16>
      %cst_49 = arith.constant dense<0.000000e+00> : vector<16x128xf32>
      %118 = tpu.matmul %117, %101, %cst_49 {dimension_numbers = #tpu.dot_dimension_numbers<[1], [0], [0], [1], [0, 0, 1, 1], [], []>} : vector<16x16xbf16>, vector<16x128xbf16>, vector<16x128xf32> -> vector<16x128xf32>
      %119 = arith.truncf %118 : vector<16x128xf32> to vector<16x128xbf16>
      %120 = arith.index_cast %arg15 : i32 to index
      %c0_50 = arith.constant 0 : index
      %c0_51 = arith.constant 0 : index
      %121 = vector.load %arg6[%120, %c0_50, %c0_51] : memref<4x128x32xbf16, #tpu.memory_space<vmem>>, vector<1x128x32xbf16>
      %122 = vector.shape_cast %121 : vector<1x128x32xbf16> to vector<128x32xbf16>
      %cst_52 = arith.constant dense<0.000000e+00> : vector<16x32xf32>
      %123 = tpu.matmul %119, %122, %cst_52 {dimension_numbers = #tpu.dot_dimension_numbers<[1], [0], [0], [1], [0, 0, 1, 1], [], []>} : vector<16x128xbf16>, vector<128x32xbf16>, vector<16x32xf32> -> vector<16x32xf32>
      %124 = arith.addf %arg16, %123 : vector<16x32xf32>
      scf.yield %124 : vector<16x32xf32>
    }
    %c4_i32_11 = arith.constant 4 : i32
    %34 = arith.addf %2, %33 : vector<16x32xf32>
    %c0_12 = arith.constant 0 : index
    %c0_13 = arith.constant 0 : index
    %35 = vector.load %arg7[%c0_12, %c0_13] : memref<1x32xf32, #tpu.memory_space<vmem>>, vector<1x32xf32>
    %36 = vector.broadcast %35 : vector<1x32xf32> to vector<16x32xf32>
    %37 = arith.addf %34, %36 : vector<16x32xf32>
    %c0_14 = arith.constant 0 : index
    %c0_15 = arith.constant 0 : index
    %38 = vector.load %arg8[%c0_14, %c0_15] : memref<1x32xf32, #tpu.memory_space<vmem>>, vector<1x32xf32>
    %c0_16 = arith.constant 0 : index
    %c0_17 = arith.constant 0 : index
    %39 = vector.load %arg9[%c0_16, %c0_17] : memref<1x32xf32, #tpu.memory_space<vmem>>, vector<1x32xf32>
    %cst_18 = arith.constant dense<0.000000e+00> : vector<16xf32>
    %40 = vector.multi_reduction <add>, %37, %cst_18 [1] : vector<16x32xf32> to vector<16xf32>
    %41 = vector.shape_cast %40 : vector<16xf32> to vector<16x1xf32>
    %cst_19 = arith.constant 3.200000e+01 : f32
    %42 = vector.broadcast %cst_19 : f32 to vector<16x1xf32>
    %43 = arith.divf %41, %42 : vector<16x1xf32>
    %44 = vector.broadcast %43 : vector<16x1xf32> to vector<16x32xf32>
    %45 = arith.subf %37, %44 : vector<16x32xf32>
    %46 = arith.mulf %45, %45 : vector<16x32xf32>
    %cst_20 = arith.constant dense<0.000000e+00> : vector<16xf32>
    %47 = vector.multi_reduction <add>, %46, %cst_20 [1] : vector<16x32xf32> to vector<16xf32>
    %48 = vector.shape_cast %47 : vector<16xf32> to vector<16x1xf32>
    %cst_21 = arith.constant 3.200000e+01 : f32
    %49 = vector.broadcast %cst_21 : f32 to vector<16x1xf32>
    %50 = arith.divf %48, %49 : vector<16x1xf32>
    %51 = vector.broadcast %43 : vector<16x1xf32> to vector<16x32xf32>
    %52 = arith.subf %37, %51 : vector<16x32xf32>
    %cst_22 = arith.constant 9.99999974E-6 : f32
    %53 = vector.broadcast %cst_22 : f32 to vector<16x1xf32>
    %54 = arith.addf %50, %53 : vector<16x1xf32>
    %55 = math.rsqrt %54 : vector<16x1xf32>
    %56 = vector.broadcast %55 : vector<16x1xf32> to vector<16x32xf32>
    %57 = arith.mulf %52, %56 : vector<16x32xf32>
    %58 = vector.broadcast %38 : vector<1x32xf32> to vector<16x32xf32>
    %59 = arith.mulf %57, %58 : vector<16x32xf32>
    %60 = vector.broadcast %39 : vector<1x32xf32> to vector<16x32xf32>
    %61 = arith.addf %59, %60 : vector<16x32xf32>
    %62 = arith.truncf %61 : vector<16x32xf32> to vector<16x32xbf16>
    %c0_23 = arith.constant 0 : index
    %c0_24 = arith.constant 0 : index
    %63 = vector.load %arg10[%c0_23, %c0_24] : memref<32x128xbf16, #tpu.memory_space<vmem>>, vector<32x128xbf16>
    %cst_25 = arith.constant dense<0.000000e+00> : vector<16x128xf32>
    %64 = tpu.matmul %62, %63, %cst_25 {dimension_numbers = #tpu.dot_dimension_numbers<[1], [0], [0], [1], [0, 0, 1, 1], [], []>} : vector<16x32xbf16>, vector<32x128xbf16>, vector<16x128xf32> -> vector<16x128xf32>
    %c0_26 = arith.constant 0 : index
    %c0_27 = arith.constant 0 : index
    %65 = vector.load %arg11[%c0_26, %c0_27] : memref<1x128xf32, #tpu.memory_space<vmem>>, vector<1x128xf32>
    %66 = vector.broadcast %65 : vector<1x128xf32> to vector<16x128xf32>
    %67 = arith.addf %64, %66 : vector<16x128xf32>
    %cst_28 = arith.constant 5.000000e-01 : f32
    %68 = vector.broadcast %cst_28 : f32 to vector<16x128xf32>
    %69 = arith.mulf %68, %67 : vector<16x128xf32>
    %cst_29 = arith.constant 0.707106769 : f32
    %70 = vector.broadcast %cst_29 : f32 to vector<16x128xf32>
    %71 = arith.mulf %67, %70 : vector<16x128xf32>
    %72 = math.erf %71 : vector<16x128xf32>
    %cst_30 = arith.constant 1.000000e+00 : f32
    %73 = vector.broadcast %cst_30 : f32 to vector<16x128xf32>
    %74 = arith.addf %73, %72 : vector<16x128xf32>
    %75 = arith.mulf %69, %74 : vector<16x128xf32>
    %76 = arith.truncf %75 : vector<16x128xf32> to vector<16x128xbf16>
    %c0_31 = arith.constant 0 : index
    %c0_32 = arith.constant 0 : index
    %77 = vector.load %arg12[%c0_31, %c0_32] : memref<128x32xbf16, #tpu.memory_space<vmem>>, vector<128x32xbf16>
    %cst_33 = arith.constant dense<0.000000e+00> : vector<16x32xf32>
    %78 = tpu.matmul %76, %77, %cst_33 {dimension_numbers = #tpu.dot_dimension_numbers<[1], [0], [0], [1], [0, 0, 1, 1], [], []>} : vector<16x128xbf16>, vector<128x32xbf16>, vector<16x32xf32> -> vector<16x32xf32>
    %79 = arith.addf %37, %78 : vector<16x32xf32>
    %c0_34 = arith.constant 0 : index
    %c0_35 = arith.constant 0 : index
    %80 = vector.load %arg13[%c0_34, %c0_35] : memref<1x32xf32, #tpu.memory_space<vmem>>, vector<1x32xf32>
    %81 = vector.broadcast %80 : vector<1x32xf32> to vector<16x32xf32>
    %82 = arith.addf %79, %81 : vector<16x32xf32>
    %83 = arith.truncf %82 : vector<16x32xf32> to vector<16x32xbf16>
    %c0_36 = arith.constant 0 : index
    %c0_37 = arith.constant 0 : index
    %c0_38 = arith.constant 0 : index
    %84 = vector.load %arg14[%c0_36, %c0_37, %c0_38] : memref<1x16x32xbf16, #tpu.memory_space<vmem>>, vector<1x16x32xbf16>
    %85 = vector.shape_cast %84 : vector<1x16x32xbf16> to vector<16x32xbf16>
    %86 = vector.shape_cast %83 : vector<16x32xbf16> to vector<1x16x32xbf16>
    tpu.vector_store %arg14[%c0_36, %c0_37, %c0_38], %86 {strides = array<i32>} : memref<1x16x32xbf16, #tpu.memory_space<vmem>>, vector<1x16x32xbf16>,
    return
  }
  func.func @transform_0(%arg0: i32) -> (i32, i32, i32) {
    %c0_i32 = arith.constant 0 : i32
    %c0_i32_0 = arith.constant 0 : i32
    %c0_i32_1 = arith.constant 0 : i32
    return %arg0, %c0_i32, %c0_i32_0 : i32, i32, i32
  }
  func.func @transform_1(%arg0: i32) -> (i32, i32) {
    %c0_i32 = arith.constant 0 : i32
    %c0_i32_0 = arith.constant 0 : i32
    %c0_i32_1 = arith.constant 0 : i32
    return %c0_i32, %c0_i32_0 : i32, i32
  }
  func.func @transform_2(%arg0: i32) -> (i32, i32) {
    %c0_i32 = arith.constant 0 : i32
    %c0_i32_0 = arith.constant 0 : i32
    %c0_i32_1 = arith.constant 0 : i32
    return %c0_i32, %c0_i32_0 : i32, i32
  }
  func.func @transform_3(%arg0: i32) -> (i32, i32, i32) {
    %c0_i32 = arith.constant 0 : i32
    %c0_i32_0 = arith.constant 0 : i32
    %c0_i32_1 = arith.constant 0 : i32
    %c0_i32_2 = arith.constant 0 : i32
    return %c0_i32, %c0_i32_0, %c0_i32_1 : i32, i32, i32
  }
  func.func @transform_4(%arg0: i32) -> (i32, i32, i32) {
    %c0_i32 = arith.constant 0 : i32
    %c0_i32_0 = arith.constant 0 : i32
    %c0_i32_1 = arith.constant 0 : i32
    %c0_i32_2 = arith.constant 0 : i32
    return %c0_i32, %c0_i32_0, %c0_i32_1 : i32, i32, i32
  }
  func.func @transform_5(%arg0: i32) -> (i32, i32, i32) {
    %c0_i32 = arith.constant 0 : i32
    %c0_i32_0 = arith.constant 0 : i32
    %c0_i32_1 = arith.constant 0 : i32
    %c0_i32_2 = arith.constant 0 : i32
    return %c0_i32, %c0_i32_0, %c0_i32_1 : i32, i32, i32
  }
  func.func @transform_6(%arg0: i32) -> (i32, i32) {
    %c0_i32 = arith.constant 0 : i32
    %c0_i32_0 = arith.constant 0 : i32
    %c0_i32_1 = arith.constant 0 : i32
    return %c0_i32, %c0_i32_0 : i32, i32
  }
  func.func @transform_7(%arg0: i32) -> (i32, i32) {
    %c0_i32 = arith.constant 0 : i32
    %c0_i32_0 = arith.constant 0 : i32
    %c0_i32_1 = arith.constant 0 : i32
    return %c0_i32, %c0_i32_0 : i32, i32
  }
  func.func @transform_8(%arg0: i32) -> (i32, i32) {
    %c0_i32 = arith.constant 0 : i32
    %c0_i32_0 = arith.constant 0 : i32
    %c0_i32_1 = arith.constant 0 : i32
    return %c0_i32, %c0_i32_0 : i32, i32
  }
  func.func @transform_9(%arg0: i32) -> (i32, i32) {
    %c0_i32 = arith.constant 0 : i32
    %c0_i32_0 = arith.constant 0 : i32
    %c0_i32_1 = arith.constant 0 : i32
    return %c0_i32, %c0_i32_0 : i32, i32
  }
  func.func @transform_10(%arg0: i32) -> (i32, i32) {
    %c0_i32 = arith.constant 0 : i32
    %c0_i32_0 = arith.constant 0 : i32
    %c0_i32_1 = arith.constant 0 : i32
    return %c0_i32, %c0_i32_0 : i32, i32
  }
  func.func @transform_11(%arg0: i32) -> (i32, i32) {
    %c0_i32 = arith.constant 0 : i32
    %c0_i32_0 = arith.constant 0 : i32
    %c0_i32_1 = arith.constant 0 : i32
    return %c0_i32, %c0_i32_0 : i32, i32
  }
  func.func @transform_12(%arg0: i32) -> (i32, i32) {
    %c0_i32 = arith.constant 0 : i32
    %c0_i32_0 = arith.constant 0 : i32
    %c0_i32_1 = arith.constant 0 : i32
    return %c0_i32, %c0_i32_0 : i32, i32
  }
  func.func @transform_13(%arg0: i32) -> (i32, i32, i32) {
    %c0_i32 = arith.constant 0 : i32
    %c0_i32_0 = arith.constant 0 : i32
    %c0_i32_1 = arith.constant 0 : i32
    return %arg0, %c0_i32, %c0_i32_0 : i32, i32, i32
  }
}

module attributes {stable_mosaic.version = 11 : i64} {
  func.func @_final_kernel(%arg0: i32, %arg1: memref<32x32xbf16, #tpu.memory_space<vmem>>, %arg2: memref<1x32xf32, #tpu.memory_space<vmem>>, %arg3: memref<1x32xf32, #tpu.memory_space<vmem>>, %arg4: memref<32x128xbf16, #tpu.memory_space<vmem>>, %arg5: memref<1x128xf32, #tpu.memory_space<vmem>>, %arg6: memref<32x128xf32, #tpu.memory_space<vmem>>) attributes {dimension_semantics = [#tpu.dimension_semantics<parallel>], iteration_bounds = array<i64: 1>, scalar_prefetch = 0 : i64, scratch_operands = 0 : i64, tpu.core_type = #tpu.core_type<tc>, window_params = [{transform_indices = @transform_0, window_bounds = array<i64: 32, 32>}, {pipeline_mode = #tpu.pipeline_mode<synchronous>, transform_indices = @transform_1, window_bounds = array<i64: 1, 32>}, {pipeline_mode = #tpu.pipeline_mode<synchronous>, transform_indices = @transform_2, window_bounds = array<i64: 1, 32>}, {pipeline_mode = #tpu.pipeline_mode<synchronous>, transform_indices = @transform_3, window_bounds = array<i64: 32, 128>}, {pipeline_mode = #tpu.pipeline_mode<synchronous>, transform_indices = @transform_4, window_bounds = array<i64: 1, 128>}, {transform_indices = @transform_5, window_bounds = array<i64: 32, 128>}]} {
    %c0 = arith.constant 0 : index
    %c0_0 = arith.constant 0 : index
    %0 = vector.load %arg1[%c0, %c0_0] : memref<32x32xbf16, #tpu.memory_space<vmem>>, vector<32x32xbf16>
    %1 = arith.extf %0 : vector<32x32xbf16> to vector<32x32xf32>
    %c0_1 = arith.constant 0 : index
    %c0_2 = arith.constant 0 : index
    %2 = vector.load %arg2[%c0_1, %c0_2] : memref<1x32xf32, #tpu.memory_space<vmem>>, vector<1x32xf32>
    %c0_3 = arith.constant 0 : index
    %c0_4 = arith.constant 0 : index
    %3 = vector.load %arg3[%c0_3, %c0_4] : memref<1x32xf32, #tpu.memory_space<vmem>>, vector<1x32xf32>
    %cst = arith.constant dense<0.000000e+00> : vector<32xf32>
    %4 = vector.multi_reduction <add>, %1, %cst [1] : vector<32x32xf32> to vector<32xf32>
    %5 = vector.shape_cast %4 : vector<32xf32> to vector<32x1xf32>
    %cst_5 = arith.constant 3.200000e+01 : f32
    %6 = vector.broadcast %cst_5 : f32 to vector<32x1xf32>
    %7 = arith.divf %5, %6 : vector<32x1xf32>
    %8 = vector.broadcast %7 : vector<32x1xf32> to vector<32x32xf32>
    %9 = arith.subf %1, %8 : vector<32x32xf32>
    %10 = arith.mulf %9, %9 : vector<32x32xf32>
    %cst_6 = arith.constant dense<0.000000e+00> : vector<32xf32>
    %11 = vector.multi_reduction <add>, %10, %cst_6 [1] : vector<32x32xf32> to vector<32xf32>
    %12 = vector.shape_cast %11 : vector<32xf32> to vector<32x1xf32>
    %cst_7 = arith.constant 3.200000e+01 : f32
    %13 = vector.broadcast %cst_7 : f32 to vector<32x1xf32>
    %14 = arith.divf %12, %13 : vector<32x1xf32>
    %15 = vector.broadcast %7 : vector<32x1xf32> to vector<32x32xf32>
    %16 = arith.subf %1, %15 : vector<32x32xf32>
    %cst_8 = arith.constant 9.99999974E-6 : f32
    %17 = vector.broadcast %cst_8 : f32 to vector<32x1xf32>
    %18 = arith.addf %14, %17 : vector<32x1xf32>
    %19 = math.rsqrt %18 : vector<32x1xf32>
    %20 = vector.broadcast %19 : vector<32x1xf32> to vector<32x32xf32>
    %21 = arith.mulf %16, %20 : vector<32x32xf32>
    %22 = vector.broadcast %2 : vector<1x32xf32> to vector<32x32xf32>
    %23 = arith.mulf %21, %22 : vector<32x32xf32>
    %24 = vector.broadcast %3 : vector<1x32xf32> to vector<32x32xf32>
    %25 = arith.addf %23, %24 : vector<32x32xf32>
    %26 = arith.truncf %25 : vector<32x32xf32> to vector<32x32xbf16>
    %c0_9 = arith.constant 0 : index
    %c0_10 = arith.constant 0 : index
    %27 = vector.load %arg4[%c0_9, %c0_10] : memref<32x128xbf16, #tpu.memory_space<vmem>>, vector<32x128xbf16>
    %cst_11 = arith.constant dense<0.000000e+00> : vector<32x128xf32>
    %28 = tpu.matmul %26, %27, %cst_11 {dimension_numbers = #tpu.dot_dimension_numbers<[1], [0], [0], [1], [0, 0, 1, 1], [], []>} : vector<32x32xbf16>, vector<32x128xbf16>, vector<32x128xf32> -> vector<32x128xf32>
    %c0_12 = arith.constant 0 : index
    %c0_13 = arith.constant 0 : index
    %29 = vector.load %arg5[%c0_12, %c0_13] : memref<1x128xf32, #tpu.memory_space<vmem>>, vector<1x128xf32>
    %30 = vector.broadcast %29 : vector<1x128xf32> to vector<32x128xf32>
    %31 = arith.addf %28, %30 : vector<32x128xf32>
    %c0_14 = arith.constant 0 : index
    %c0_15 = arith.constant 0 : index
    %32 = vector.load %arg6[%c0_14, %c0_15] : memref<32x128xf32, #tpu.memory_space<vmem>>, vector<32x128xf32>
    tpu.vector_store %arg6[%c0_14, %c0_15], %31 {strides = array<i32>} : memref<32x128xf32, #tpu.memory_space<vmem>>, vector<32x128xf32>,
    return
  }
  func.func @transform_0(%arg0: i32) -> (i32, i32) {
    %c0_i32 = arith.constant 0 : i32
    %c0_i32_0 = arith.constant 0 : i32
    return %arg0, %c0_i32 : i32, i32
  }
  func.func @transform_1(%arg0: i32) -> (i32, i32) {
    %c0_i32 = arith.constant 0 : i32
    %c0_i32_0 = arith.constant 0 : i32
    %c0_i32_1 = arith.constant 0 : i32
    return %c0_i32, %c0_i32_0 : i32, i32
  }
  func.func @transform_2(%arg0: i32) -> (i32, i32) {
    %c0_i32 = arith.constant 0 : i32
    %c0_i32_0 = arith.constant 0 : i32
    %c0_i32_1 = arith.constant 0 : i32
    return %c0_i32, %c0_i32_0 : i32, i32
  }
  func.func @transform_3(%arg0: i32) -> (i32, i32) {
    %c0_i32 = arith.constant 0 : i32
    %c0_i32_0 = arith.constant 0 : i32
    %c0_i32_1 = arith.constant 0 : i32
    return %c0_i32, %c0_i32_0 : i32, i32
  }
  func.func @transform_4(%arg0: i32) -> (i32, i32) {
    %c0_i32 = arith.constant 0 : i32
    %c0_i32_0 = arith.constant 0 : i32
    %c0_i32_1 = arith.constant 0 : i32
    return %c0_i32, %c0_i32_0 : i32, i32
  }
  func.func @transform_5(%arg0: i32) -> (i32, i32) {
    %c0_i32 = arith.constant 0 : i32
    %c0_i32_0 = arith.constant 0 : i32
    return %arg0, %c0_i32 : i32, i32
  }
}

</mosaic_0001>

<llo_original>
// kernel: squeeze.1
$region0: #{squeeze.1}
  %s0 = inlined_call_operand.vmem [shape: f32[32], index: 0, kind: input, shape index: {}]
  %s1 = inlined_call_operand.vmem [shape: f32[2,16], index: 1, kind: output, shape index: {}]
  $region1: #{squeeze.1} parent=0
    #allocation0 [shape = 'u8[4096]{0}', space=vmem, size = 0x1000, scoped, tag = 'scoped mem for output reshape']
    #allocation1 [shape = 'u8[4096]{0}', space=vmem, size = 0x1000, scoped, tag = 'scoped mem for input reshape']
    %s3 = sshllo.u32 0, 1
    %v4 = vld [vmem:[%s0] sm:%s3]
    %5 = vst [vmem:[#allocation1] sm:%s3] %v4
    %v6 = vld [vmem:[#allocation1] sm:$0x1]
    %vm7 = vcmask 130048
    %8 = vst.msk [vmem:[#allocation0] sm:$0x1] %vm7, %v6
    %v9 = vld [vmem:[#allocation1] sm:$0x1]
    %10 = vrot.lane.b32.xlu0 %v9, 112
    %v11 = vpop.permute.xlu0 %10
    %vm12 = vcmask 130048
    %s13 = scalar_lea.vmem [#allocation0], 1
    %14 = vst.msk [vmem:[%s13] sm:$0x1] %vm12, %v11
    %s16 = sshllo.u32 0, 2
    %v18 = vld [vmem:[#allocation0] sm:%s16]
    %s19 = sshllo.u32 0, 2
    %20 = vst [vmem:[%s1] sm:%s19] %v18

// kernel: transformer_forward.4
$region0: #{transformer_forward.4}
  #allocation0 [shape = 'u32[]', space=smem, size = 0x4, offset = 0x4, fixed_abs, tag = 'smem constant byte address 0x4 - core index']
  #allocation1 [shape = 'u32[144,128]{1,0:T(1,128)}', space=vmem, size = 0x12000, scoped, tag = 'internal scratch']
  %s0 = inlined_call_operand.vmem [shape: f32[2,16,4], index: 0, kind: input, shape index: {}]
  %s1 = inlined_call_operand.vmem [shape: bf16[4,32], index: 1, kind: input, shape index: {}]
  %s2 = inlined_call_operand.vmem [shape: f32[1,32], index: 2, kind: input, shape index: {}]
  %s3 = inlined_call_operand.vmem [shape: f32[16,32], index: 3, kind: input, shape index: {}]
  %s4 = inlined_call_operand.vmem [shape: bf16[2,16,32], index: 4, kind: output, shape index: {}]
  %s5 = sld [smem:[#allocation0]]
  $region49: #{transformer_forward.4} parent=0
    _
  %s7 = ssub.s32 1, %s5
  %s8 = scalar_select 0, %s7, %s5
  loop: start=0, step=1, limit=4
  $region2: #{transformer_forward.4} parent=0 // loop_pre_header
    _
  $region3: #{transformer_forward.4} parent=0 // loop_header
    %s10 = sphi 0, %s14
    %p11 = scmp.ge.s32.totalorder %s10, 4
    %s20 = sphi 0, %s22
    %s23 = sphi 0, %s20
    %s24 = sphi 0, %s23
    %s40 = sphi 0, %s24
    %s44 = sphi 0, %s44
    %s46 = sphi 0, %s44
    %s47 = sphi 0, %s46
    %s61 = sphi 0, %s47
    %s65 = sphi 0, %s65
    %s67 = sphi 0, %s65
    %s68 = sphi 0, %s67
    %s82 = sphi 0, %s68
    %s86 = sphi 0, %s86
    %s88 = sphi 0, %s86
    %s89 = sphi 0, %s88
    %s103 = sphi 0, %s89
    %s109 = sphi 0, %s111
    %s112 = sphi 0, %s109
    %s113 = sphi 0, %s112
    %s129 = sphi 0, %s113
  $region4: #{transformer_forward.4} parent=0 // loop_header_branch
    %13 = sbr.rel (%p11) target = $region8
  $region5: #{transformer_forward.4} parent=0 // loop_body
    %s15 = ssub.s32 %s10, 1
    %s16 = ssub.s32 %s10, 2
    %s17 = sadd.s32 %s10, 1
    %s18 = ssub.s32 %s10, %s17
    %p19 = scmp.eq.s32.totalorder %s18, 0
    %s21 = sadd.s32 %s20, 1
    %s22 = scalar_select %p19, %s20, %s21
    %p25 = pneg %p19
    %p26 = scmp.eq.s32.totalorder %s10, 1
    %p27 = por %p25, %p26
    %p28 = scmp.ne.s32.totalorder %s20, %s23
    %p29 = scmp.eq.s32.totalorder %s10, 0
    %p30 = por %p28, %p29
    %p31 = scmp.ne.s32.totalorder %s20, %s23
    %p32 = scmp.eq.s32.totalorder %s15, 1
    %p33 = por %p31, %p32
    %p34 = scmp.ne.s32.totalorder %s23, %s24
    %p35 = scmp.eq.s32.totalorder %s15, 0
    %p36 = por %p34, %p35
    %p37 = scmp.ne.s32.totalorder %s23, %s24
    %p38 = scmp.eq.s32.totalorder %s16, 1
    %p39 = por %p37, %p38
    %p41 = scmp.ne.s32.totalorder %s24, %s40
    %p42 = scmp.eq.s32.totalorder %s16, 0
    %p43 = por %p41, %p42
    %s45 = sadd.s32 %s44, 1
    %p48 = scmp.eq.s32.totalorder %s10, 1
    %p49 = scmp.ne.s32.totalorder %s44, %s46
    %p50 = scmp.eq.s32.totalorder %s10, 0
    %p51 = por %p49, %p50
    %p52 = scmp.ne.s32.totalorder %s44, %s46
    %p53 = scmp.eq.s32.totalorder %s15, 1
    %p54 = por %p52, %p53
    %p55 = scmp.ne.s32.totalorder %s46, %s47
    %p56 = scmp.eq.s32.totalorder %s15, 0
    %p57 = por %p55, %p56
    %p58 = scmp.ne.s32.totalorder %s46, %s47
    %p59 = scmp.eq.s32.totalorder %s16, 1
    %p60 = por %p58, %p59
    %p62 = scmp.ne.s32.totalorder %s47, %s61
    %p63 = scmp.eq.s32.totalorder %s16, 0
    %p64 = por %p62, %p63
    %s66 = sadd.s32 %s65, 1
    %p69 = scmp.eq.s32.totalorder %s10, 1
    %p70 = scmp.ne.s32.totalorder %s65, %s67
    %p71 = scmp.eq.s32.totalorder %s10, 0
    %p72 = por %p70, %p71
    %p73 = scmp.ne.s32.totalorder %s65, %s67
    %p74 = scmp.eq.s32.totalorder %s15, 1
    %p75 = por %p73, %p74
    %p76 = scmp.ne.s32.totalorder %s67, %s68
    %p77 = scmp.eq.s32.totalorder %s15, 0
    %p78 = por %p76, %p77
    %p79 = scmp.ne.s32.totalorder %s67, %s68
    %p80 = scmp.eq.s32.totalorder %s16, 1
    %p81 = por %p79, %p80
    %p83 = scmp.ne.s32.totalorder %s68, %s82
    %p84 = scmp.eq.s32.totalorder %s16, 0
    %p85 = por %p83, %p84
    %s87 = sadd.s32 %s86, 1
    %p90 = scmp.eq.s32.totalorder %s10, 1
    %p91 = scmp.ne.s32.totalorder %s86, %s88
    %p92 = scmp.eq.s32.totalorder %s10, 0
    %p93 = por %p91, %p92
    %p94 = scmp.ne.s32.totalorder %s86, %s88
    %p95 = scmp.eq.s32.totalorder %s15, 1
    %p96 = por %p94, %p95
    %p97 = scmp.ne.s32.totalorder %s88, %s89
    %p98 = scmp.eq.s32.totalorder %s15, 0
    %p99 = por %p97, %p98
    %p100 = scmp.ne.s32.totalorder %s88, %s89
    %p101 = scmp.eq.s32.totalorder %s16, 1
    %p102 = por %p100, %p101
    %p104 = scmp.ne.s32.totalorder %s89, %s103
    %p105 = scmp.eq.s32.totalorder %s16, 0
    %p106 = por %p104, %p105
    %s107 = ssub.s32 %s10, %s17
    %p108 = scmp.eq.s32.totalorder %s107, 0
    %s110 = sadd.s32 %s109, 1
    %s111 = scalar_select %p108, %s109, %s110
    %p114 = pneg %p108
    %p115 = scmp.eq.s32.totalorder %s10, 1
    %p116 = por %p114, %p115
    %p117 = scmp.ne.s32.totalorder %s109, %s112
    %p118 = scmp.eq.s32.totalorder %s10, 0
    %p119 = por %p117, %p118
    %p120 = scmp.ne.s32.totalorder %s109, %s112
    %p121 = scmp.eq.s32.totalorder %s15, 1
    %p122 = por %p120, %p121
    %p123 = scmp.ne.s32.totalorder %s112, %s113
    %p124 = scmp.eq.s32.totalorder %s15, 0
    %p125 = por %p123, %p124
    %p126 = scmp.ne.s32.totalorder %s112, %s113
    %p127 = scmp.eq.s32.totalorder %s16, 1
    %p128 = por %p126, %p127
    %p130 = scmp.ne.s32.totalorder %s113, %s129
    %p131 = scmp.eq.s32.totalorder %s16, 0
    %p132 = por %p130, %p131
    %p133 = scmp.le.s32.totalorder 1, %s10
    %p134 = scmp.lt.s32.totalorder %s10, 3
    %p135 = pnand %p133, %p134
    %p136 = pneg %p135
    // Predicated region
    $region9: #{transformer_forward.4} parent=5 // pred_check
      _
    $region10: #{transformer_forward.4} parent=5 // pred_check_branch
      %138 = sbr.rel (%p135) target = $region12
    $region11: #{transformer_forward.4} parent=5 // pred_region
      %s139 = ssub.s32 %s10, 1
      // Predicated region
      $region13: #{transformer_forward.4} parent=11 // pred_check
        %p140 = pneg %p57
      $region14: #{transformer_forward.4} parent=11 // pred_check_branch
        %142 = sbr.rel (%p140) target = $region16
      $region15: #{transformer_forward.4} parent=11 // pred_region
        _
      $region16: #{transformer_forward.4} parent=11 // pred_fallthru
        _
      // Predicated region
      $region17: #{transformer_forward.4} parent=11 // pred_check
        %p143 = pneg %p78
      $region18: #{transformer_forward.4} parent=11 // pred_check_branch
        %145 = sbr.rel (%p143) target = $region20
      $region19: #{transformer_forward.4} parent=11 // pred_region
        _
      $region20: #{transformer_forward.4} parent=11 // pred_fallthru
        _
      // Predicated region
      $region21: #{transformer_forward.4} parent=11 // pred_check
        %p146 = pneg %p99
      $region22: #{transformer_forward.4} parent=11 // pred_check_branch
        %148 = sbr.rel (%p146) target = $region24
      $region23: #{transformer_forward.4} parent=11 // pred_region
        _
      $region24: #{transformer_forward.4} parent=11 // pred_fallthru
        _
    $region12: #{transformer_forward.4} parent=5 // pred_fallthru
      _
    %p149 = scmp.lt.s32.totalorder %s10, 2
    // Predicated region
    $region25: #{transformer_forward.4} parent=5 // pred_check
      %p150 = pneg %p149
    $region26: #{transformer_forward.4} parent=5 // pred_check_branch
      %152 = sbr.rel (%p150) target = $region28
    $region27: #{transformer_forward.4} parent=5 // pred_region
      // Predicated region
      $region29: #{transformer_forward.4} parent=27 // pred_check
        %p153 = pneg %p30
      $region30: #{transformer_forward.4} parent=27 // pred_check_branch
        %155 = sbr.rel (%p153) target = $region32
      $region31: #{transformer_forward.4} parent=27 // pred_region
        %p156 = scmp.lt.s32.totalorder %s10, 1
        %s157 = scalar_select %p156, %s10, 1
        %s158 = smul.addr %s157, 2
        %s159 = smul.addr %s158, 8
        %s160 = scalar_lea.vmem %s0, %s159
      $region32: #{transformer_forward.4} parent=27 // pred_fallthru
        _
    $region28: #{transformer_forward.4} parent=5 // pred_fallthru
      _
    %p161 = scmp.le.s32.totalorder 1, %s10
    %p162 = scmp.lt.s32.totalorder %s10, 3
    %p163 = pnand %p161, %p162
    %p164 = pneg %p163
    // Predicated region
    $region33: #{transformer_forward.4} parent=5 // pred_check
      _
    $region34: #{transformer_forward.4} parent=5 // pred_check_branch
      %166 = sbr.rel (%p163) target = $region36
    $region35: #{transformer_forward.4} parent=5 // pred_region
      %s167 = ssub.s32 %s10, 1
      %p168 = scmp.lt.s32.totalorder %s15, 1
      %s169 = scalar_select %p168, %s15, 1
      %s170 = smul.addr %s169, 2
      %s171 = smul.addr %s170, 8
      %s172 = scalar_lea.vmem %s0, %s171
      %p173 = pneg %p36
      %p174 = pneg %p33
      %p175 = pneg %p57
      %p176 = pneg %p54
      %p177 = pneg %p78
      %p178 = pneg %p75
      %p179 = pneg %p99
      %p180 = pneg %p96
      %p181 = pneg %p125
      %p182 = pneg %p122
      %p183 = scmp.lt.s32.totalorder %s15, 1
      %s184 = scalar_select %p183, %s15, 1
      %s185 = smul.addr %s184, 2
      %s186 = smul.addr %s185, 4
      %s187 = scalar_lea.vmem %s4, %s186
      %p188 = scmp.lt.s32.totalorder %s15, 1
      %s189 = scalar_select %p188, %s15, 1
      %s190 = smul.addr %s189, 2
      %s191 = smul.addr %s190, 8
      %s192 = scalar_lea.vmem %s0, %s191
      %p193 = scmp.lt.s32.totalorder %s15, 1
      %s194 = scalar_select %p193, %s15, 1
      %s195 = smul.addr %s194, 2
      %s196 = smul.addr %s195, 4
      %s197 = scalar_lea.vmem %s4, %s196
      %v199 = vld [vmem:[%s192] sm:$0xff]
      %v200 = vld [vmem:[%s192 + $0x8] sm:$0xff]
      %v201 = vpack.c.bf16 %v200, %v199
      %v202 = vld [vmem:[%s1] sm:$0x3]
      %v203 = vld [vmem:[%s2] sm:$0x1]
      %v205 = vlaneseq
      %v206 = vshrl.u32 %v205, 7
      %v207 = vsub.s32 0, %v206
      %v208 = vrot.slane %v203, %v207
      %vm210 = vcmask 31744
      %v212 = vsel %vm210, %v201, 0
      %vm214 = vcmask 1041408
      %v216 = vsel %vm214, %v202, 0
      %218 = vmatprep.subr.bf16.mxu0 0
      %219 = vmatpush1.bf16.msra.mxu0 %v216
      %220 = vmatprep.subr.bf16.mxu0 0
      %221 = vmatpush1.bf16.msra.mxu0 0
      %222 = vmatprep.subr.bf16.mxu0 0
      %223 = vmatpush1.bf16.msra.mxu0 0
      %224 = vmatprep.subr.bf16.mxu0 0
      %225 = vmatpush1.bf16.msra.mxu0 0
      %226 = vmatprep.subr.bf16.mxu0 0
      %227 = vmatpush1.bf16.msra.mxu0 0
      %228 = vmatprep.subr.bf16.mxu0 0
      %229 = vmatpush1.bf16.msra.mxu0 0
      %230 = vmatprep.subr.bf16.mxu0 0
      %231 = vmatpush1.bf16.msra.mxu0 0
      %232 = vmatprep.subr.bf16.mxu0 0
      %233 = vmatpush1.bf16.msra.mxu0 0
      %234 = vmatprep.subr.bf16.mxu0 0
      %235 = vmatpush1.bf16.msra.mxu0 0
      %236 = vmatprep.subr.bf16.mxu0 0
      %237 = vmatpush1.bf16.msra.mxu0 0
      %238 = vmatprep.subr.bf16.mxu0 0
      %239 = vmatpush1.bf16.msra.mxu0 0
      %240 = vmatprep.subr.bf16.mxu0 0
      %241 = vmatpush1.bf16.msra.mxu0 0
      %242 = vmatprep.subr.bf16.mxu0 0
      %243 = vmatpush1.bf16.msra.mxu0 0
      %244 = vmatprep.subr.bf16.mxu0 0
      %245 = vmatpush1.bf16.msra.mxu0 0
      %246 = vmatprep.subr.bf16.mxu0 0
      %247 = vmatpush1.bf16.msra.mxu0 0
      %248 = vmatprep.subr.bf16.mxu0 0
      %249 = vmatpush1.bf16.msra.mxu0 0
      %250 = vmatprep.mubr.bf16.mxu0 0
      %251 = vmatmul.mubr.bf16.gmra.mrb[0].mxu0 %v212
      %v252 = vpop.f32.mrb[0].mxu0
      %v253 = vadd.f32 %v208, %v252
      %v254 = vpop.f32.mrb[0].mxu0
      %v255 = vpop.f32.mrb[0].mxu0
      %v256 = vadd.f32 %v208, %v255
      %v257 = vpop.f32.mrb[0].mxu0
      %258 = vdwg.mxu0
      %v259 = vld [vmem:[%s3] sm:$0xff]
      %v260 = vld [vmem:[%s3 + $0x8] sm:$0xff]
      %v261 = vadd.f32 %v253, %v259
      %v262 = vadd.f32 %v256, %v260
      %v263 = vpack.c.bf16 %v262, %v261
      %v265 = vunpack.c.l.b16 %v263
      %v266 = vunpack.c.h.b16 %v263
      %v267 = vpack.c.b16 %v265, %v265
      %v268 = vpack.c.b16 %v266, %v266
      %vm271 = vcmask 257024
      %272 = vst.msk [vmem:[%s197] sm:$0xf] %vm271, %v267
      %273 = vst.msk [vmem:[%s197 + $0x4] sm:$0xf] %vm271, %v268
      %p274 = scmp.lt.s32.totalorder %s15, 1
      %s275 = scalar_select %p274, %s15, 1
      %s276 = smul.addr %s275, 2
      %s277 = smul.addr %s276, 4
      %s278 = scalar_lea.vmem %s4, %s277
      // Predicated region
      $region37: #{transformer_forward.4} parent=35 // pred_check
        %p279 = pneg %p122
      $region38: #{transformer_forward.4} parent=35 // pred_check_branch
        %281 = sbr.rel (%p279) target = $region40
      $region39: #{transformer_forward.4} parent=35 // pred_region
        _
      $region40: #{transformer_forward.4} parent=35 // pred_fallthru
        _
    $region36: #{transformer_forward.4} parent=5 // pred_fallthru
      _
    %p282 = scmp.le.s32.totalorder 2, %s10
    // Predicated region
    $region41: #{transformer_forward.4} parent=5 // pred_check
      %p283 = pneg %p282
    $region42: #{transformer_forward.4} parent=5 // pred_check_branch
      %285 = sbr.rel (%p283) target = $region44
    $region43: #{transformer_forward.4} parent=5 // pred_region
      %s286 = ssub.s32 %s10, 2
      // Predicated region
      $region45: #{transformer_forward.4} parent=43 // pred_check
        %p287 = pneg %p128
      $region46: #{transformer_forward.4} parent=43 // pred_check_branch
        %289 = sbr.rel (%p287) target = $region48
      $region47: #{transformer_forward.4} parent=43 // pred_region
        %p290 = scmp.lt.s32.totalorder %s16, 1
        %s291 = scalar_select %p290, %s16, 1
        %s292 = smul.addr %s291, 2
        %s293 = smul.addr %s292, 4
        %s294 = scalar_lea.vmem %s4, %s293
      $region48: #{transformer_forward.4} parent=43 // pred_fallthru
        _
    $region44: #{transformer_forward.4} parent=5 // pred_fallthru
      _
  $region6: #{transformer_forward.4} parent=0 // loop_footer
    %s14 = sadd.s32 1, %s10
  $region7: #{transformer_forward.4} parent=0 // loop_footer_branch
    %9 = sbr.rel target = $region3
  $region8: #{transformer_forward.4} parent=0 // loop_exit
    _

// kernel: transformer_forward.7
$region0: #{transformer_forward.7}
  #allocation0 [shape = 'u32[]', space=smem, size = 0x4, offset = 0x4, fixed_abs, tag = 'smem constant byte address 0x4 - core index']
  #allocation1 [shape = 'u32[144,128]{1,0:T(1,128)}', space=vmem, size = 0x12000, scoped, tag = 'internal scratch']
  %s0 = inlined_call_operand.vmem [shape: bf16[32,32], index: 0, kind: input, shape index: {}]
  %s1 = inlined_call_operand.vmem [shape: f32[1,32], index: 1, kind: input, shape index: {}]
  %s2 = inlined_call_operand.vmem [shape: f32[1,32], index: 2, kind: input, shape index: {}]
  %s3 = inlined_call_operand.vmem [shape: bf16[32,128], index: 3, kind: input, shape index: {}]
  %s4 = inlined_call_operand.vmem [shape: f32[1,128], index: 4, kind: input, shape index: {}]
  %s5 = inlined_call_operand.vmem [shape: f32[32,128], index: 5, kind: output, shape index: {}]
  %s6 = sld [smem:[#allocation0]]
  $region30: #{transformer_forward.7} parent=0
    _
  %s8 = ssub.s32 1, %s6
  %s9 = scalar_select 0, %s8, %s6
  // Predicated region
  $region2: #{transformer_forward.7} parent=0 // pred_check
    _
  $region3: #{transformer_forward.7} parent=0 // pred_check_branch
    %11 = sbr.rel (0) target = $region5
  $region4: #{transformer_forward.7} parent=0 // pred_region
    _
  $region5: #{transformer_forward.7} parent=0 // pred_fallthru
    _
  // Predicated region
  $region6: #{transformer_forward.7} parent=0 // pred_check
    _
  $region7: #{transformer_forward.7} parent=0 // pred_check_branch
    %13 = sbr.rel (0) target = $region9
  $region8: #{transformer_forward.7} parent=0 // pred_region
    _
  $region9: #{transformer_forward.7} parent=0 // pred_fallthru
    _
  // Predicated region
  $region10: #{transformer_forward.7} parent=0 // pred_check
    _
  $region11: #{transformer_forward.7} parent=0 // pred_check_branch
    %15 = sbr.rel (0) target = $region13
  $region12: #{transformer_forward.7} parent=0 // pred_region
    _
  $region13: #{transformer_forward.7} parent=0 // pred_fallthru
    _
  // Predicated region
  $region14: #{transformer_forward.7} parent=0 // pred_check
    _
  $region15: #{transformer_forward.7} parent=0 // pred_check_branch
    %17 = sbr.rel (0) target = $region17
  $region16: #{transformer_forward.7} parent=0 // pred_region
    _
  $region17: #{transformer_forward.7} parent=0 // pred_fallthru
    _
  // Predicated region
  $region18: #{transformer_forward.7} parent=0 // pred_check
    _
  $region19: #{transformer_forward.7} parent=0 // pred_check_branch
    %19 = sbr.rel (0) target = $region21
  $region20: #{transformer_forward.7} parent=0 // pred_region
    _
  $region21: #{transformer_forward.7} parent=0 // pred_fallthru
    _
  %v21 = vld [vmem:[%s0] sm:$0xf]
  %v22 = vld [vmem:[%s0 + $0x4] sm:$0xf]
  %v23 = vld [vmem:[%s0 + $0x8] sm:$0xf]
  %v24 = vld [vmem:[%s0 + $0xc] sm:$0xf]
  %v25 = vunpack.c.l.bf16 %v21
  %v26 = vunpack.c.l.bf16 %v22
  %v27 = vunpack.c.l.bf16 %v23
  %v28 = vunpack.c.l.bf16 %v24
  %v29 = vld [vmem:[%s1] sm:$0x1]
  %v30 = vld [vmem:[%s2] sm:$0x1]
  %vm31 = vcmask 261120
  %v32 = vsel %vm31, %v25, 0.0
  %33 = vadd.xlane.f32.xlu0 %v32
  %v34 = vpop.xlane.xlu0 %33
  %v35 = vsel %vm31, %v26, 0.0
  %36 = vadd.xlane.f32.xlu0 %v35
  %v37 = vpop.xlane.xlu0 %36
  %v38 = vsel %vm31, %v27, 0.0
  %39 = vadd.xlane.f32.xlu0 %v38
  %v40 = vpop.xlane.xlu0 %39
  %v41 = vsel %vm31, %v28, 0.0
  %42 = vadd.xlane.f32.xlu0 %v41
  %v43 = vpop.xlane.xlu0 %42
  %v44 = vrcp.pop 32.0
  %v45 = vmul.f32 %v34, %v44
  %v46 = vmul.f32 %v37, %v44
  %v47 = vmul.f32 %v40, %v44
  %v48 = vmul.f32 %v43, %v44
  %v49 = vsub.f32 %v25, %v45
  %v50 = vsub.f32 %v26, %v46
  %v51 = vsub.f32 %v27, %v47
  %v52 = vsub.f32 %v28, %v48
  %v53 = vmul.f32 %v49, %v49
  %v54 = vmul.f32 %v50, %v50
  %v55 = vmul.f32 %v51, %v51
  %v56 = vmul.f32 %v52, %v52
  %v57 = vsel %vm31, %v53, 0.0
  %58 = vadd.xlane.f32.xlu0 %v57
  %v59 = vpop.xlane.xlu0 %58
  %v60 = vsel %vm31, %v54, 0.0
  %61 = vadd.xlane.f32.xlu0 %v60
  %v62 = vpop.xlane.xlu0 %61
  %v63 = vsel %vm31, %v55, 0.0
  %64 = vadd.xlane.f32.xlu0 %v63
  %v65 = vpop.xlane.xlu0 %64
  %v66 = vsel %vm31, %v56, 0.0
  %67 = vadd.xlane.f32.xlu0 %v66
  %v68 = vpop.xlane.xlu0 %67
  %v69 = vmul.f32 %v59, %v44
  %v70 = vmul.f32 %v62, %v44
  %v71 = vmul.f32 %v65, %v44
  %v72 = vmul.f32 %v68, %v44
  %v73 = vadd.f32 %v69, 1e-05
  %v74 = vadd.f32 %v70, 1e-05
  %v75 = vadd.f32 %v71, 1e-05
  %v76 = vadd.f32 %v72, 1e-05
  %v77 = vrsqrt.pop %v73
  %v78 = vrsqrt.pop %v74
  %v79 = vrsqrt.pop %v75
  %v80 = vrsqrt.pop %v76
  %v81 = vmul.f32 %v49, %v77
  %v82 = vmul.f32 %v50, %v78
  %v83 = vmul.f32 %v51, %v79
  %v84 = vmul.f32 %v52, %v80
  %v86 = vlaneseq
  %v87 = vshrl.u32 %v86, 7
  %v88 = vsub.s32 0, %v87
  %v89 = vrot.slane %v29, %v88
  %v91 = vmul.f32 %v81, %v89
  %v92 = vmul.f32 %v82, %v89
  %v93 = vmul.f32 %v83, %v89
  %v94 = vmul.f32 %v84, %v89
  %v96 = vlaneseq
  %v97 = vshrl.u32 %v96, 7
  %v98 = vsub.s32 0, %v97
  %v99 = vrot.slane %v30, %v98
  %v101 = vadd.f32 %v91, %v99
  %v102 = vadd.f32 %v92, %v99
  %v103 = vadd.f32 %v93, %v99
  %v104 = vadd.f32 %v94, %v99
  %v105 = vpack.c.bf16 %v102, %v101
  %v106 = vpack.c.bf16 %v104, %v103
  %v107 = vld [vmem:[%s3] sm:$0xf]
  %v108 = vld [vmem:[%s3 + $0x4] sm:$0xf]
  %v109 = vld [vmem:[%s3 + $0x8] sm:$0xf]
  %v110 = vld [vmem:[%s3 + $0xc] sm:$0xf]
  %v111 = vld [vmem:[%s4] sm:$0x1]
  %v113 = vlaneseq
  %v114 = vshrl.u32 %v113, 7
  %v115 = vsub.s32 0, %v114
  %v116 = vrot.slane %v111, %v115
  %v122 = vunpack.c.l.b16 %v107
  %v123 = vunpack.c.l.b16 %v108
  %v124 = vunpack.c.l.b16 %v109
  %v125 = vunpack.c.l.b16 %v110
  %v126 = vpack.c.b16 %v123, %v122
  %v127 = vpack.c.b16 %v125, %v124
  %v131 = vsel %vm31, %v105, 0
  %v134 = vsel %vm31, %v106, 0
  %136 = vmatprep.subr.bf16.mxu0 0
  %137 = vmatpush1.bf16.msra.mxu0 %v126
  %138 = vmatprep.subr.bf16.mxu0 0
  %139 = vmatpush1.bf16.msra.mxu0 %v127
  %140 = vmatprep.subr.bf16.mxu0 0
  %141 = vmatpush1.bf16.msra.mxu0 0
  %142 = vmatprep.subr.bf16.mxu0 0
  %143 = vmatpush1.bf16.msra.mxu0 0
  %144 = vmatprep.subr.bf16.mxu0 0
  %145 = vmatpush1.bf16.msra.mxu0 0
  %146 = vmatprep.subr.bf16.mxu0 0
  %147 = vmatpush1.bf16.msra.mxu0 0
  %148 = vmatprep.subr.bf16.mxu0 0
  %149 = vmatpush1.bf16.msra.mxu0 0
  %150 = vmatprep.subr.bf16.mxu0 0
  %151 = vmatpush1.bf16.msra.mxu0 0
  %152 = vmatprep.subr.bf16.mxu0 0
  %153 = vmatpush1.bf16.msra.mxu0 0
  %154 = vmatprep.subr.bf16.mxu0 0
  %155 = vmatpush1.bf16.msra.mxu0 0
  %156 = vmatprep.subr.bf16.mxu0 0
  %157 = vmatpush1.bf16.msra.mxu0 0
  %158 = vmatprep.subr.bf16.mxu0 0
  %159 = vmatpush1.bf16.msra.mxu0 0
  %160 = vmatprep.subr.bf16.mxu0 0
  %161 = vmatpush1.bf16.msra.mxu0 0
  %162 = vmatprep.subr.bf16.mxu0 0
  %163 = vmatpush1.bf16.msra.mxu0 0
  %164 = vmatprep.subr.bf16.mxu0 0
  %165 = vmatpush1.bf16.msra.mxu0 0
  %166 = vmatprep.subr.bf16.mxu0 0
  %167 = vmatpush1.bf16.msra.mxu0 0
  %168 = vmatprep.mubr.bf16.mxu0 0
  %169 = vmatmul.mubr.bf16.gmra.mrb[0].mxu0 %v131
  %v170 = vpop.f32.mrb[0].mxu0
  %v171 = vadd.f32 %v116, %v170
  %v172 = vpop.f32.mrb[0].mxu0
  %v173 = vpop.f32.mrb[0].mxu0
  %v174 = vadd.f32 %v116, %v173
  %v175 = vpop.f32.mrb[0].mxu0
  %176 = vmatprep.mubr.bf16.mxu0 0
  %177 = vmatmul.mubr.bf16.gmra.mrb[0].mxu0 %v134
  %v178 = vpop.f32.mrb[0].mxu0
  %v179 = vadd.f32 %v116, %v178
  %v180 = vpop.f32.mrb[0].mxu0
  %v181 = vpop.f32.mrb[0].mxu0
  %v182 = vadd.f32 %v116, %v181
  %v183 = vpop.f32.mrb[0].mxu0
  %184 = vdwg.mxu0
  %185 = vst [vmem:[%s5] sm:$0xff] %v171
  %186 = vst [vmem:[%s5 + $0x8] sm:$0xff] %v174
  %187 = vst [vmem:[%s5 + $0x10] sm:$0xff] %v179
  %188 = vst [vmem:[%s5 + $0x18] sm:$0xff] %v182
  // Predicated region
  $region22: #{transformer_forward.7} parent=0 // pred_check
    _
  $region23: #{transformer_forward.7} parent=0 // pred_check_branch
    %190 = sbr.rel (0) target = $region25
  $region24: #{transformer_forward.7} parent=0 // pred_region
    _
  $region25: #{transformer_forward.7} parent=0 // pred_fallthru
    _
  // Predicated region
  $region26: #{transformer_forward.7} parent=0 // pred_check
    _
  $region27: #{transformer_forward.7} parent=0 // pred_check_branch
    %192 = sbr.rel (0) target = $region29
  $region28: #{transformer_forward.7} parent=0 // pred_region
    _
  $region29: #{transformer_forward.7} parent=0 // pred_fallthru
    _

// kernel: transformer_forward.5
$region0: #{transformer_forward.5}
  #allocation0 [shape = 'u32[]', space=smem, size = 0x4, offset = 0x4, fixed_abs, tag = 'smem constant byte address 0x4 - core index']
  #allocation1 [shape = 'u32[144,128]{1,0:T(1,128)}', space=vmem, size = 0x12000, scoped, tag = 'internal scratch']
  %s0 = inlined_call_operand.vmem [shape: bf16[2,16,32], index: 0, kind: input, shape index: {}]
  %s1 = inlined_call_operand.vmem [shape: f32[1,32], index: 1, kind: input, shape index: {}]
  %s2 = inlined_call_operand.vmem [shape: f32[1,32], index: 2, kind: input, shape index: {}]
  %s3 = inlined_call_operand.vmem [shape: bf16[4,32,384], index: 3, kind: input, shape index: {}]
  %s4 = inlined_call_operand.vmem [shape: f32[4,1,384], index: 4, kind: input, shape index: {}]
  %s5 = inlined_call_operand.vmem [shape: bf16[4,128,32], index: 5, kind: input, shape index: {}]
  %s6 = inlined_call_operand.vmem [shape: f32[1,32], index: 6, kind: input, shape index: {}]
  %s7 = inlined_call_operand.vmem [shape: f32[1,32], index: 7, kind: input, shape index: {}]
  %s8 = inlined_call_operand.vmem [shape: f32[1,32], index: 8, kind: input, shape index: {}]
  %s9 = inlined_call_operand.vmem [shape: bf16[32,128], index: 9, kind: input, shape index: {}]
  %s10 = inlined_call_operand.vmem [shape: f32[1,128], index: 10, kind: input, shape index: {}]
  %s11 = inlined_call_operand.vmem [shape: bf16[128,32], index: 11, kind: input, shape index: {}]
  %s12 = inlined_call_operand.vmem [shape: f32[1,32], index: 12, kind: input, shape index: {}]
  %s13 = inlined_call_operand.vmem [shape: bf16[2,16,32], index: 13, kind: output, shape index: {}]
  %s14 = sld [smem:[#allocation0]]
  $region92: #{transformer_forward.5} parent=0
    _
  %s16 = ssub.s32 1, %s14
  %s17 = scalar_select 0, %s16, %s14
  loop: start=0, step=1, limit=4
  $region2: #{transformer_forward.5} parent=0 // loop_pre_header
    _
  $region3: #{transformer_forward.5} parent=0 // loop_header
    %s19 = sphi 0, %s23
    %p20 = scmp.ge.s32.totalorder %s19, 4
    %s29 = sphi 0, %s31
    %s32 = sphi 0, %s29
    %s33 = sphi 0, %s32
    %s49 = sphi 0, %s33
    %s53 = sphi 0, %s53
    %s55 = sphi 0, %s53
    %s56 = sphi 0, %s55
    %s70 = sphi 0, %s56
    %s74 = sphi 0, %s74
    %s76 = sphi 0, %s74
    %s77 = sphi 0, %s76
    %s91 = sphi 0, %s77
    %s95 = sphi 0, %s95
    %s97 = sphi 0, %s95
    %s98 = sphi 0, %s97
    %s112 = sphi 0, %s98
    %s116 = sphi 0, %s116
    %s118 = sphi 0, %s116
    %s119 = sphi 0, %s118
    %s133 = sphi 0, %s119
    %s137 = sphi 0, %s137
    %s139 = sphi 0, %s137
    %s140 = sphi 0, %s139
    %s154 = sphi 0, %s140
    %s158 = sphi 0, %s158
    %s160 = sphi 0, %s158
    %s161 = sphi 0, %s160
    %s175 = sphi 0, %s161
    %s179 = sphi 0, %s179
    %s181 = sphi 0, %s179
    %s182 = sphi 0, %s181
    %s196 = sphi 0, %s182
    %s200 = sphi 0, %s200
    %s202 = sphi 0, %s200
    %s203 = sphi 0, %s202
    %s217 = sphi 0, %s203
    %s221 = sphi 0, %s221
    %s223 = sphi 0, %s221
    %s224 = sphi 0, %s223
    %s238 = sphi 0, %s224
    %s242 = sphi 0, %s242
    %s244 = sphi 0, %s242
    %s245 = sphi 0, %s244
    %s259 = sphi 0, %s245
    %s263 = sphi 0, %s263
    %s265 = sphi 0, %s263
    %s266 = sphi 0, %s265
    %s280 = sphi 0, %s266
    %s284 = sphi 0, %s284
    %s286 = sphi 0, %s284
    %s287 = sphi 0, %s286
    %s301 = sphi 0, %s287
    %s307 = sphi 0, %s309
    %s310 = sphi 0, %s307
    %s311 = sphi 0, %s310
    %s327 = sphi 0, %s311
  $region4: #{transformer_forward.5} parent=0 // loop_header_branch
    %22 = sbr.rel (%p20) target = $region8
  $region5: #{transformer_forward.5} parent=0 // loop_body
    %s24 = ssub.s32 %s19, 1
    %s25 = ssub.s32 %s19, 2
    %s26 = sadd.s32 %s19, 1
    %s27 = ssub.s32 %s19, %s26
    %p28 = scmp.eq.s32.totalorder %s27, 0
    %s30 = sadd.s32 %s29, 1
    %s31 = scalar_select %p28, %s29, %s30
    %p34 = pneg %p28
    %p35 = scmp.eq.s32.totalorder %s19, 1
    %p36 = por %p34, %p35
    %p37 = scmp.ne.s32.totalorder %s29, %s32
    %p38 = scmp.eq.s32.totalorder %s19, 0
    %p39 = por %p37, %p38
    %p40 = scmp.ne.s32.totalorder %s29, %s32
    %p41 = scmp.eq.s32.totalorder %s24, 1
    %p42 = por %p40, %p41
    %p43 = scmp.ne.s32.totalorder %s32, %s33
    %p44 = scmp.eq.s32.totalorder %s24, 0
    %p45 = por %p43, %p44
    %p46 = scmp.ne.s32.totalorder %s32, %s33
    %p47 = scmp.eq.s32.totalorder %s25, 1
    %p48 = por %p46, %p47
    %p50 = scmp.ne.s32.totalorder %s33, %s49
    %p51 = scmp.eq.s32.totalorder %s25, 0
    %p52 = por %p50, %p51
    %s54 = sadd.s32 %s53, 1
    %p57 = scmp.eq.s32.totalorder %s19, 1
    %p58 = scmp.ne.s32.totalorder %s53, %s55
    %p59 = scmp.eq.s32.totalorder %s19, 0
    %p60 = por %p58, %p59
    %p61 = scmp.ne.s32.totalorder %s53, %s55
    %p62 = scmp.eq.s32.totalorder %s24, 1
    %p63 = por %p61, %p62
    %p64 = scmp.ne.s32.totalorder %s55, %s56
    %p65 = scmp.eq.s32.totalorder %s24, 0
    %p66 = por %p64, %p65
    %p67 = scmp.ne.s32.totalorder %s55, %s56
    %p68 = scmp.eq.s32.totalorder %s25, 1
    %p69 = por %p67, %p68
    %p71 = scmp.ne.s32.totalorder %s56, %s70
    %p72 = scmp.eq.s32.totalorder %s25, 0
    %p73 = por %p71, %p72
    %s75 = sadd.s32 %s74, 1
    %p78 = scmp.eq.s32.totalorder %s19, 1
    %p79 = scmp.ne.s32.totalorder %s74, %s76
    %p80 = scmp.eq.s32.totalorder %s19, 0
    %p81 = por %p79, %p80
    %p82 = scmp.ne.s32.totalorder %s74, %s76
    %p83 = scmp.eq.s32.totalorder %s24, 1
    %p84 = por %p82, %p83
    %p85 = scmp.ne.s32.totalorder %s76, %s77
    %p86 = scmp.eq.s32.totalorder %s24, 0
    %p87 = por %p85, %p86
    %p88 = scmp.ne.s32.totalorder %s76, %s77
    %p89 = scmp.eq.s32.totalorder %s25, 1
    %p90 = por %p88, %p89
    %p92 = scmp.ne.s32.totalorder %s77, %s91
    %p93 = scmp.eq.s32.totalorder %s25, 0
    %p94 = por %p92, %p93
    %s96 = sadd.s32 %s95, 1
    %p99 = scmp.eq.s32.totalorder %s19, 1
    %p100 = scmp.ne.s32.totalorder %s95, %s97
    %p101 = scmp.eq.s32.totalorder %s19, 0
    %p102 = por %p100, %p101
    %p103 = scmp.ne.s32.totalorder %s95, %s97
    %p104 = scmp.eq.s32.totalorder %s24, 1
    %p105 = por %p103, %p104
    %p106 = scmp.ne.s32.totalorder %s97, %s98
    %p107 = scmp.eq.s32.totalorder %s24, 0
    %p108 = por %p106, %p107
    %p109 = scmp.ne.s32.totalorder %s97, %s98
    %p110 = scmp.eq.s32.totalorder %s25, 1
    %p111 = por %p109, %p110
    %p113 = scmp.ne.s32.totalorder %s98, %s112
    %p114 = scmp.eq.s32.totalorder %s25, 0
    %p115 = por %p113, %p114
    %s117 = sadd.s32 %s116, 1
    %p120 = scmp.eq.s32.totalorder %s19, 1
    %p121 = scmp.ne.s32.totalorder %s116, %s118
    %p122 = scmp.eq.s32.totalorder %s19, 0
    %p123 = por %p121, %p122
    %p124 = scmp.ne.s32.totalorder %s116, %s118
    %p125 = scmp.eq.s32.totalorder %s24, 1
    %p126 = por %p124, %p125
    %p127 = scmp.ne.s32.totalorder %s118, %s119
    %p128 = scmp.eq.s32.totalorder %s24, 0
    %p129 = por %p127, %p128
    %p130 = scmp.ne.s32.totalorder %s118, %s119
    %p131 = scmp.eq.s32.totalorder %s25, 1
    %p132 = por %p130, %p131
    %p134 = scmp.ne.s32.totalorder %s119, %s133
    %p135 = scmp.eq.s32.totalorder %s25, 0
    %p136 = por %p134, %p135
    %s138 = sadd.s32 %s137, 1
    %p141 = scmp.eq.s32.totalorder %s19, 1
    %p142 = scmp.ne.s32.totalorder %s137, %s139
    %p143 = scmp.eq.s32.totalorder %s19, 0
    %p144 = por %p142, %p143
    %p145 = scmp.ne.s32.totalorder %s137, %s139
    %p146 = scmp.eq.s32.totalorder %s24, 1
    %p147 = por %p145, %p146
    %p148 = scmp.ne.s32.totalorder %s139, %s140
    %p149 = scmp.eq.s32.totalorder %s24, 0
    %p150 = por %p148, %p149
    %p151 = scmp.ne.s32.totalorder %s139, %s140
    %p152 = scmp.eq.s32.totalorder %s25, 1
    %p153 = por %p151, %p152
    %p155 = scmp.ne.s32.totalorder %s140, %s154
    %p156 = scmp.eq.s32.totalorder %s25, 0
    %p157 = por %p155, %p156
    %s159 = sadd.s32 %s158, 1
    %p162 = scmp.eq.s32.totalorder %s19, 1
    %p163 = scmp.ne.s32.totalorder %s158, %s160
    %p164 = scmp.eq.s32.totalorder %s19, 0
    %p165 = por %p163, %p164
    %p166 = scmp.ne.s32.totalorder %s158, %s160
    %p167 = scmp.eq.s32.totalorder %s24, 1
    %p168 = por %p166, %p167
    %p169 = scmp.ne.s32.totalorder %s160, %s161
    %p170 = scmp.eq.s32.totalorder %s24, 0
    %p171 = por %p169, %p170
    %p172 = scmp.ne.s32.totalorder %s160, %s161
    %p173 = scmp.eq.s32.totalorder %s25, 1
    %p174 = por %p172, %p173
    %p176 = scmp.ne.s32.totalorder %s161, %s175
    %p177 = scmp.eq.s32.totalorder %s25, 0
    %p178 = por %p176, %p177
    %s180 = sadd.s32 %s179, 1
    %p183 = scmp.eq.s32.totalorder %s19, 1
    %p184 = scmp.ne.s32.totalorder %s179, %s181
    %p185 = scmp.eq.s32.totalorder %s19, 0
    %p186 = por %p184, %p185
    %p187 = scmp.ne.s32.totalorder %s179, %s181
    %p188 = scmp.eq.s32.totalorder %s24, 1
    %p189 = por %p187, %p188
    %p190 = scmp.ne.s32.totalorder %s181, %s182
    %p191 = scmp.eq.s32.totalorder %s24, 0
    %p192 = por %p190, %p191
    %p193 = scmp.ne.s32.totalorder %s181, %s182
    %p194 = scmp.eq.s32.totalorder %s25, 1
    %p195 = por %p193, %p194
    %p197 = scmp.ne.s32.totalorder %s182, %s196
    %p198 = scmp.eq.s32.totalorder %s25, 0
    %p199 = por %p197, %p198
    %s201 = sadd.s32 %s200, 1
    %p204 = scmp.eq.s32.totalorder %s19, 1
    %p205 = scmp.ne.s32.totalorder %s200, %s202
    %p206 = scmp.eq.s32.totalorder %s19, 0
    %p207 = por %p205, %p206
    %p208 = scmp.ne.s32.totalorder %s200, %s202
    %p209 = scmp.eq.s32.totalorder %s24, 1
    %p210 = por %p208, %p209
    %p211 = scmp.ne.s32.totalorder %s202, %s203
    %p212 = scmp.eq.s32.totalorder %s24, 0
    %p213 = por %p211, %p212
    %p214 = scmp.ne.s32.totalorder %s202, %s203
    %p215 = scmp.eq.s32.totalorder %s25, 1
    %p216 = por %p214, %p215
    %p218 = scmp.ne.s32.totalorder %s203, %s217
    %p219 = scmp.eq.s32.totalorder %s25, 0
    %p220 = por %p218, %p219
    %s222 = sadd.s32 %s221, 1
    %p225 = scmp.eq.s32.totalorder %s19, 1
    %p226 = scmp.ne.s32.totalorder %s221, %s223
    %p227 = scmp.eq.s32.totalorder %s19, 0
    %p228 = por %p226, %p227
    %p229 = scmp.ne.s32.totalorder %s221, %s223
    %p230 = scmp.eq.s32.totalorder %s24, 1
    %p231 = por %p229, %p230
    %p232 = scmp.ne.s32.totalorder %s223, %s224
    %p233 = scmp.eq.s32.totalorder %s24, 0
    %p234 = por %p232, %p233
    %p235 = scmp.ne.s32.totalorder %s223, %s224
    %p236 = scmp.eq.s32.totalorder %s25, 1
    %p237 = por %p235, %p236
    %p239 = scmp.ne.s32.totalorder %s224, %s238
    %p240 = scmp.eq.s32.totalorder %s25, 0
    %p241 = por %p239, %p240
    %s243 = sadd.s32 %s242, 1
    %p246 = scmp.eq.s32.totalorder %s19, 1
    %p247 = scmp.ne.s32.totalorder %s242, %s244
    %p248 = scmp.eq.s32.totalorder %s19, 0
    %p249 = por %p247, %p248
    %p250 = scmp.ne.s32.totalorder %s242, %s244
    %p251 = scmp.eq.s32.totalorder %s24, 1
    %p252 = por %p250, %p251
    %p253 = scmp.ne.s32.totalorder %s244, %s245
    %p254 = scmp.eq.s32.totalorder %s24, 0
    %p255 = por %p253, %p254
    %p256 = scmp.ne.s32.totalorder %s244, %s245
    %p257 = scmp.eq.s32.totalorder %s25, 1
    %p258 = por %p256, %p257
    %p260 = scmp.ne.s32.totalorder %s245, %s259
    %p261 = scmp.eq.s32.totalorder %s25, 0
    %p262 = por %p260, %p261
    %s264 = sadd.s32 %s263, 1
    %p267 = scmp.eq.s32.totalorder %s19, 1
    %p268 = scmp.ne.s32.totalorder %s263, %s265
    %p269 = scmp.eq.s32.totalorder %s19, 0
    %p270 = por %p268, %p269
    %p271 = scmp.ne.s32.totalorder %s263, %s265
    %p272 = scmp.eq.s32.totalorder %s24, 1
    %p273 = por %p271, %p272
    %p274 = scmp.ne.s32.totalorder %s265, %s266
    %p275 = scmp.eq.s32.totalorder %s24, 0
    %p276 = por %p274, %p275
    %p277 = scmp.ne.s32.totalorder %s265, %s266
    %p278 = scmp.eq.s32.totalorder %s25, 1
    %p279 = por %p277, %p278
    %p281 = scmp.ne.s32.totalorder %s266, %s280
    %p282 = scmp.eq.s32.totalorder %s25, 0
    %p283 = por %p281, %p282
    %s285 = sadd.s32 %s284, 1
    %p288 = scmp.eq.s32.totalorder %s19, 1
    %p289 = scmp.ne.s32.totalorder %s284, %s286
    %p290 = scmp.eq.s32.totalorder %s19, 0
    %p291 = por %p289, %p290
    %p292 = scmp.ne.s32.totalorder %s284, %s286
    %p293 = scmp.eq.s32.totalorder %s24, 1
    %p294 = por %p292, %p293
    %p295 = scmp.ne.s32.totalorder %s286, %s287
    %p296 = scmp.eq.s32.totalorder %s24, 0
    %p297 = por %p295, %p296
    %p298 = scmp.ne.s32.totalorder %s286, %s287
    %p299 = scmp.eq.s32.totalorder %s25, 1
    %p300 = por %p298, %p299
    %p302 = scmp.ne.s32.totalorder %s287, %s301
    %p303 = scmp.eq.s32.totalorder %s25, 0
    %p304 = por %p302, %p303
    %s305 = ssub.s32 %s19, %s26
    %p306 = scmp.eq.s32.totalorder %s305, 0
    %s308 = sadd.s32 %s307, 1
    %s309 = scalar_select %p306, %s307, %s308
    %p312 = pneg %p306
    %p313 = scmp.eq.s32.totalorder %s19, 1
    %p314 = por %p312, %p313
    %p315 = scmp.ne.s32.totalorder %s307, %s310
    %p316 = scmp.eq.s32.totalorder %s19, 0
    %p317 = por %p315, %p316
    %p318 = scmp.ne.s32.totalorder %s307, %s310
    %p319 = scmp.eq.s32.totalorder %s24, 1
    %p320 = por %p318, %p319
    %p321 = scmp.ne.s32.totalorder %s310, %s311
    %p322 = scmp.eq.s32.totalorder %s24, 0
    %p323 = por %p321, %p322
    %p324 = scmp.ne.s32.totalorder %s310, %s311
    %p325 = scmp.eq.s32.totalorder %s25, 1
    %p326 = por %p324, %p325
    %p328 = scmp.ne.s32.totalorder %s311, %s327
    %p329 = scmp.eq.s32.totalorder %s25, 0
    %p330 = por %p328, %p329
    %p331 = scmp.le.s32.totalorder 1, %s19
    %p332 = scmp.lt.s32.totalorder %s19, 3
    %p333 = pnand %p331, %p332
    %p334 = pneg %p333
    // Predicated region
    $region9: #{transformer_forward.5} parent=5 // pred_check
      _
    $region10: #{transformer_forward.5} parent=5 // pred_check_branch
      %336 = sbr.rel (%p333) target = $region12
    $region11: #{transformer_forward.5} parent=5 // pred_region
      %s337 = ssub.s32 %s19, 1
      // Predicated region
      $region13: #{transformer_forward.5} parent=11 // pred_check
        %p338 = pneg %p66
      $region14: #{transformer_forward.5} parent=11 // pred_check_branch
        %340 = sbr.rel (%p338) target = $region16
      $region15: #{transformer_forward.5} parent=11 // pred_region
        _
      $region16: #{transformer_forward.5} parent=11 // pred_fallthru
        _
      // Predicated region
      $region17: #{transformer_forward.5} parent=11 // pred_check
        %p341 = pneg %p87
      $region18: #{transformer_forward.5} parent=11 // pred_check_branch
        %343 = sbr.rel (%p341) target = $region20
      $region19: #{transformer_forward.5} parent=11 // pred_region
        _
      $region20: #{transformer_forward.5} parent=11 // pred_fallthru
        _
      // Predicated region
      $region21: #{transformer_forward.5} parent=11 // pred_check
        %p344 = pneg %p108
      $region22: #{transformer_forward.5} parent=11 // pred_check_branch
        %346 = sbr.rel (%p344) target = $region24
      $region23: #{transformer_forward.5} parent=11 // pred_region
        _
      $region24: #{transformer_forward.5} parent=11 // pred_fallthru
        _
      // Predicated region
      $region25: #{transformer_forward.5} parent=11 // pred_check
        %p347 = pneg %p129
      $region26: #{transformer_forward.5} parent=11 // pred_check_branch
        %349 = sbr.rel (%p347) target = $region28
      $region27: #{transformer_forward.5} parent=11 // pred_region
        _
      $region28: #{transformer_forward.5} parent=11 // pred_fallthru
        _
      // Predicated region
      $region29: #{transformer_forward.5} parent=11 // pred_check
        %p350 = pneg %p150
      $region30: #{transformer_forward.5} parent=11 // pred_check_branch
        %352 = sbr.rel (%p350) target = $region32
      $region31: #{transformer_forward.5} parent=11 // pred_region
        _
      $region32: #{transformer_forward.5} parent=11 // pred_fallthru
        _
      // Predicated region
      $region33: #{transformer_forward.5} parent=11 // pred_check
        %p353 = pneg %p171
      $region34: #{transformer_forward.5} parent=11 // pred_check_branch
        %355 = sbr.rel (%p353) target = $region36
      $region35: #{transformer_forward.5} parent=11 // pred_region
        _
      $region36: #{transformer_forward.5} parent=11 // pred_fallthru
        _
      // Predicated region
      $region37: #{transformer_forward.5} parent=11 // pred_check
        %p356 = pneg %p192
      $region38: #{transformer_forward.5} parent=11 // pred_check_branch
        %358 = sbr.rel (%p356) target = $region40
      $region39: #{transformer_forward.5} parent=11 // pred_region
        _
      $region40: #{transformer_forward.5} parent=11 // pred_fallthru
        _
      // Predicated region
      $region41: #{transformer_forward.5} parent=11 // pred_check
        %p359 = pneg %p213
      $region42: #{transformer_forward.5} parent=11 // pred_check_branch
        %361 = sbr.rel (%p359) target = $region44
      $region43: #{transformer_forward.5} parent=11 // pred_region
        _
      $region44: #{transformer_forward.5} parent=11 // pred_fallthru
        _
      // Predicated region
      $region45: #{transformer_forward.5} parent=11 // pred_check
        %p362 = pneg %p234
      $region46: #{transformer_forward.5} parent=11 // pred_check_branch
        %364 = sbr.rel (%p362) target = $region48
      $region47: #{transformer_forward.5} parent=11 // pred_region
        _
      $region48: #{transformer_forward.5} parent=11 // pred_fallthru
        _
      // Predicated region
      $region49: #{transformer_forward.5} parent=11 // pred_check
        %p365 = pneg %p255
      $region50: #{transformer_forward.5} parent=11 // pred_check_branch
        %367 = sbr.rel (%p365) target = $region52
      $region51: #{transformer_forward.5} parent=11 // pred_region
        _
      $region52: #{transformer_forward.5} parent=11 // pred_fallthru
        _
      // Predicated region
      $region53: #{transformer_forward.5} parent=11 // pred_check
        %p368 = pneg %p276
      $region54: #{transformer_forward.5} parent=11 // pred_check_branch
        %370 = sbr.rel (%p368) target = $region56
      $region55: #{transformer_forward.5} parent=11 // pred_region
        _
      $region56: #{transformer_forward.5} parent=11 // pred_fallthru
        _
      // Predicated region
      $region57: #{transformer_forward.5} parent=11 // pred_check
        %p371 = pneg %p297
      $region58: #{transformer_forward.5} parent=11 // pred_check_branch
        %373 = sbr.rel (%p371) target = $region60
      $region59: #{transformer_forward.5} parent=11 // pred_region
        _
      $region60: #{transformer_forward.5} parent=11 // pred_fallthru
        _
    $region12: #{transformer_forward.5} parent=5 // pred_fallthru
      _
    %p374 = scmp.lt.s32.totalorder %s19, 2
    // Predicated region
    $region61: #{transformer_forward.5} parent=5 // pred_check
      %p375 = pneg %p374
    $region62: #{transformer_forward.5} parent=5 // pred_check_branch
      %377 = sbr.rel (%p375) target = $region64
    $region63: #{transformer_forward.5} parent=5 // pred_region
      // Predicated region
      $region65: #{transformer_forward.5} parent=63 // pred_check
        %p378 = pneg %p39
      $region66: #{transformer_forward.5} parent=63 // pred_check_branch
        %380 = sbr.rel (%p378) target = $region68
      $region67: #{transformer_forward.5} parent=63 // pred_region
        %p381 = scmp.lt.s32.totalorder %s19, 1
        %s382 = scalar_select %p381, %s19, 1
        %s383 = smul.addr %s382, 2
        %s384 = smul.addr %s383, 4
        %s385 = scalar_lea.vmem %s0, %s384
      $region68: #{transformer_forward.5} parent=63 // pred_fallthru
        _
    $region64: #{transformer_forward.5} parent=5 // pred_fallthru
      _
    %p386 = scmp.le.s32.totalorder 1, %s19
    %p387 = scmp.lt.s32.totalorder %s19, 3
    %p388 = pnand %p386, %p387
    %p389 = pneg %p388
    // Predicated region
    $region69: #{transformer_forward.5} parent=5 // pred_check
      _
    $region70: #{transformer_forward.5} parent=5 // pred_check_branch
      %391 = sbr.rel (%p388) target = $region72
    $region71: #{transformer_forward.5} parent=5 // pred_region
      %s392 = ssub.s32 %s19, 1
      %p393 = scmp.lt.s32.totalorder %s24, 1
      %s394 = scalar_select %p393, %s24, 1
      %s395 = smul.addr %s394, 2
      %s396 = smul.addr %s395, 4
      %s397 = scalar_lea.vmem %s0, %s396
      %p398 = pneg %p45
      %p399 = pneg %p42
      %p400 = pneg %p66
      %p401 = pneg %p63
      %p402 = pneg %p87
      %p403 = pneg %p84
      %p404 = pneg %p108
      %p405 = pneg %p105
      %p406 = pneg %p129
      %p407 = pneg %p126
      %p408 = pneg %p150
      %p409 = pneg %p147
      %p410 = pneg %p171
      %p411 = pneg %p168
      %p412 = pneg %p192
      %p413 = pneg %p189
      %p414 = pneg %p213
      %p415 = pneg %p210
      %p416 = pneg %p234
      %p417 = pneg %p231
      %p418 = pneg %p255
      %p419 = pneg %p252
      %p420 = pneg %p276
      %p421 = pneg %p273
      %p422 = pneg %p297
      %p423 = pneg %p294
      %p424 = pneg %p323
      %p425 = pneg %p320
      %p426 = scmp.lt.s32.totalorder %s24, 1
      %s427 = scalar_select %p426, %s24, 1
      %s428 = smul.addr %s427, 2
      %s429 = smul.addr %s428, 4
      %s430 = scalar_lea.vmem %s13, %s429
      %p431 = scmp.lt.s32.totalorder %s24, 1
      %s432 = scalar_select %p431, %s24, 1
      %s433 = smul.addr %s432, 2
      %s434 = smul.addr %s433, 4
      %s435 = scalar_lea.vmem %s0, %s434
      %p436 = scmp.lt.s32.totalorder %s24, 1
      %s437 = scalar_select %p436, %s24, 1
      %s438 = smul.addr %s437, 2
      %s439 = smul.addr %s438, 4
      %s440 = scalar_lea.vmem %s13, %s439
      %v442 = vld [vmem:[%s435] sm:$0xf]
      %v443 = vld [vmem:[%s435 + $0x4] sm:$0xf]
      %v444 = vunpack.c.l.bf16 %v442
      %v445 = vunpack.c.l.bf16 %v443
      %v446 = vld [vmem:[%s1] sm:$0x1]
      %v447 = vld [vmem:[%s2] sm:$0x1]
      %vm448 = vcmask 261120
      %v449 = vsel %vm448, %v444, 0.0
      %450 = vadd.xlane.f32.xlu0 %v449
      %v451 = vpop.xlane.xlu0 %450
      %v452 = vsel %vm448, %v445, 0.0
      %453 = vadd.xlane.f32.xlu0 %v452
      %v454 = vpop.xlane.xlu0 %453
      %v455 = vrcp.pop 32.0
      %v456 = vmul.f32 %v451, %v455
      %v457 = vmul.f32 %v454, %v455
      %v458 = vsub.f32 %v444, %v456
      %v459 = vsub.f32 %v445, %v457
      %v460 = vmul.f32 %v458, %v458
      %v461 = vmul.f32 %v459, %v459
      %v462 = vsel %vm448, %v460, 0.0
      %463 = vadd.xlane.f32.xlu0 %v462
      %v464 = vpop.xlane.xlu0 %463
      %v465 = vsel %vm448, %v461, 0.0
      %466 = vadd.xlane.f32.xlu0 %v465
      %v467 = vpop.xlane.xlu0 %466
      %v468 = vmul.f32 %v464, %v455
      %v469 = vmul.f32 %v467, %v455
      %v470 = vadd.f32 %v468, 1e-05
      %v471 = vadd.f32 %v469, 1e-05
      %v472 = vrsqrt.pop %v470
      %v473 = vrsqrt.pop %v471
      %v474 = vmul.f32 %v458, %v472
      %v475 = vmul.f32 %v459, %v473
      %v477 = vlaneseq
      %v478 = vshrl.u32 %v477, 7
      %v479 = vsub.s32 0, %v478
      %v480 = vrot.slane %v446, %v479
      %v482 = vmul.f32 %v474, %v480
      %v483 = vmul.f32 %v475, %v480
      %v485 = vlaneseq
      %v486 = vshrl.u32 %v485, 7
      %v487 = vsub.s32 0, %v486
      %v488 = vrot.slane %v447, %v487
      %v490 = vadd.f32 %v482, %v488
      %v491 = vadd.f32 %v483, %v488
      %v492 = vpack.c.bf16 %v491, %v490
      %v493 = vlaneseq
      %v494 = vshrl.u32 %v493, 7
      %v495 = vadd.s32 %v494, 8
      %v496 = vlaneseq
      %v497 = vand.u32 %v496, 127
      %vm498 = vcmp.le.s32.totalorder %v497, %v494
      %vm499 = vcmp.le.s32.totalorder %v497, %v495
      loop: start=0, step=1, limit=4
      $region73: #{transformer_forward.5} parent=71 // loop_pre_header
        _
      $region74: #{transformer_forward.5} parent=71 // loop_header
        %s501 = sphi 0, %s505
        %p502 = scmp.ge.s32.totalorder %s501, 4
        %v506 = vphi 0.0, %v882
        %v507 = vphi 0.0, %v883
      $region75: #{transformer_forward.5} parent=71 // loop_header_branch
        %504 = sbr.rel (%p502) target = $region79
      $region76: #{transformer_forward.5} parent=71 // loop_body
        %s508 = smul.u32 %s501, 12
        %s509 = smul.addr %s508, 4
        %s510 = scalar_lea.vmem %s3, %s509
        %v511 = vld [vmem:[%s510] sm:$0xff]
        %v512 = vld [vmem:[%s510 + $0x8] sm:$0xf]
        %v513 = vld [vmem:[%s510 + $0xc] sm:$0xff]
        %v514 = vld [vmem:[%s510 + $0x14] sm:$0xf]
        %v515 = vld [vmem:[%s510 + $0x18] sm:$0xff]
        %v516 = vld [vmem:[%s510 + $0x20] sm:$0xf]
        %v517 = vld [vmem:[%s510 + $0x24] sm:$0xff]
        %v518 = vld [vmem:[%s510 + $0x2c] sm:$0xf]
        %s519 = smul.u32 %s501, 3
        %s520 = scalar_lea.vmem %s4, %s519
        %v521 = vld [vmem:[%s520] sm:$0x7]
        %v523 = vlaneseq
        %v524 = vshrl.u32 %v523, 7
        %v525 = vsub.s32 0, %v524
        %v526 = vrot.slane %v521, %v525
        %v527 = vlaneseq
        %v528 = vshrl.u32 %v527, 7
        %v529 = vsub.s32 1, %v528
        %v530 = vrot.slane %v521, %v529
        %v531 = vlaneseq
        %v532 = vshrl.u32 %v531, 7
        %v533 = vsub.s32 2, %v532
        %v534 = vrot.slane %v521, %v533
        %v546 = vunpack.c.l.b16 %v511
        %v547 = vunpack.c.h.b16 %v511
        %v548 = vunpack.c.l.b16 %v512
        %v549 = vunpack.c.l.b16 %v513
        %v550 = vunpack.c.h.b16 %v513
        %v551 = vunpack.c.l.b16 %v514
        %v552 = vunpack.c.l.b16 %v515
        %v553 = vunpack.c.h.b16 %v515
        %v554 = vunpack.c.l.b16 %v516
        %v555 = vunpack.c.l.b16 %v517
        %v556 = vunpack.c.h.b16 %v517
        %v557 = vunpack.c.l.b16 %v518
        %v558 = vpack.c.b16 %v549, %v546
        %v559 = vpack.c.b16 %v550, %v547
        %v560 = vpack.c.b16 %v551, %v548
        %v561 = vpack.c.b16 %v555, %v552
        %v562 = vpack.c.b16 %v556, %v553
        %v563 = vpack.c.b16 %v557, %v554
        %v571 = vsel %vm448, %v492, 0
        %573 = vmatprep.subr.bf16.mxu0 %v559
        %574 = vmatpush1.bf16.msra.mxu0 %v558
        %575 = vmatprep.subr.bf16.mxu0 %v562
        %576 = vmatpush1.bf16.msra.mxu0 %v561
        %577 = vmatprep.subr.bf16.mxu0 0
        %578 = vmatpush1.bf16.msra.mxu0 0
        %579 = vmatprep.subr.bf16.mxu0 0
        %580 = vmatpush1.bf16.msra.mxu0 0
        %581 = vmatprep.subr.bf16.mxu0 0
        %582 = vmatpush1.bf16.msra.mxu0 0
        %583 = vmatprep.subr.bf16.mxu0 0
        %584 = vmatpush1.bf16.msra.mxu0 0
        %585 = vmatprep.subr.bf16.mxu0 0
        %586 = vmatpush1.bf16.msra.mxu0 0
        %587 = vmatprep.subr.bf16.mxu0 0
        %588 = vmatpush1.bf16.msra.mxu0 0
        %589 = vmatprep.subr.bf16.mxu0 0
        %590 = vmatpush1.bf16.msra.mxu0 0
        %591 = vmatprep.subr.bf16.mxu0 0
        %592 = vmatpush1.bf16.msra.mxu0 0
        %593 = vmatprep.subr.bf16.mxu0 0
        %594 = vmatpush1.bf16.msra.mxu0 0
        %595 = vmatprep.subr.bf16.mxu0 0
        %596 = vmatpush1.bf16.msra.mxu0 0
        %597 = vmatprep.subr.bf16.mxu0 0
        %598 = vmatpush1.bf16.msra.mxu0 0
        %599 = vmatprep.subr.bf16.mxu0 0
        %600 = vmatpush1.bf16.msra.mxu0 0
        %601 = vmatprep.subr.bf16.mxu0 0
        %602 = vmatpush1.bf16.msra.mxu0 0
        %603 = vmatprep.subr.bf16.mxu0 0
        %604 = vmatpush1.bf16.msra.mxu0 0
        %605 = vmatprep.mubr.bf16.mxu0 0
        %606 = vmatmul.mubr.bf16.gmra.mrb[0].mxu0 %v571
        %v607 = vpop.f32.mrb[0].mxu0
        %v608 = vadd.f32 %v526, %v607
        %v609 = vpop.f32.mrb[0].mxu0
        %v610 = vadd.f32 %v530, %v609
        %v611 = vpop.f32.mrb[0].mxu0
        %v612 = vadd.f32 %v526, %v611
        %v613 = vpop.f32.mrb[0].mxu0
        %v614 = vadd.f32 %v530, %v613
        %615 = vdwg.mxu0
        %616 = vmatprep.subr.bf16.mxu0 0
        %617 = vmatpush1.bf16.msra.mxu0 %v560
        %618 = vmatprep.subr.bf16.mxu0 0
        %619 = vmatpush1.bf16.msra.mxu0 %v563
        %620 = vmatprep.subr.bf16.mxu0 0
        %621 = vmatpush1.bf16.msra.mxu0 0
        %622 = vmatprep.subr.bf16.mxu0 0
        %623 = vmatpush1.bf16.msra.mxu0 0
        %624 = vmatprep.subr.bf16.mxu0 0
        %625 = vmatpush1.bf16.msra.mxu0 0
        %626 = vmatprep.subr.bf16.mxu0 0
        %627 = vmatpush1.bf16.msra.mxu0 0
        %628 = vmatprep.subr.bf16.mxu0 0
        %629 = vmatpush1.bf16.msra.mxu0 0
        %630 = vmatprep.subr.bf16.mxu0 0
        %631 = vmatpush1.bf16.msra.mxu0 0
        %632 = vmatprep.subr.bf16.mxu0 0
        %633 = vmatpush1.bf16.msra.mxu0 0
        %634 = vmatprep.subr.bf16.mxu0 0
        %635 = vmatpush1.bf16.msra.mxu0 0
        %636 = vmatprep.subr.bf16.mxu0 0
        %637 = vmatpush1.bf16.msra.mxu0 0
        %638 = vmatprep.subr.bf16.mxu0 0
        %639 = vmatpush1.bf16.msra.mxu0 0
        %640 = vmatprep.subr.bf16.mxu0 0
        %641 = vmatpush1.bf16.msra.mxu0 0
        %642 = vmatprep.subr.bf16.mxu0 0
        %643 = vmatpush1.bf16.msra.mxu0 0
        %644 = vmatprep.subr.bf16.mxu0 0
        %645 = vmatpush1.bf16.msra.mxu0 0
        %646 = vmatprep.subr.bf16.mxu0 0
        %647 = vmatpush1.bf16.msra.mxu0 0
        %648 = vmatprep.mubr.bf16.mxu0 0
        %649 = vmatmul.mubr.bf16.gmra.mrb[0].mxu0 %v571
        %v650 = vpop.f32.mrb[0].mxu0
        %v651 = vadd.f32 %v534, %v650
        %v652 = vpop.f32.mrb[0].mxu0
        %v653 = vpop.f32.mrb[0].mxu0
        %v654 = vadd.f32 %v534, %v653
        %v655 = vpop.f32.mrb[0].mxu0
        %656 = vdwg.mxu0
        %v657 = vpack.c.bf16 %v612, %v608
        %v658 = vpack.c.bf16 %v614, %v610
        %v659 = vpack.c.bf16 %v654, %v651
        %660 = vmatprep.subr.bf16.mxu0 0
        %661 = vmatpush1.bf16.xpose.msra.mxu0 %v658
        %662 = vmatprep.subr.bf16.mxu0 0
        %663 = vmatpush1.bf16.xpose.msra.mxu0 0
        %664 = vmatprep.subr.bf16.mxu0 0
        %665 = vmatpush1.bf16.xpose.msra.mxu0 0
        %666 = vmatprep.subr.bf16.mxu0 0
        %667 = vmatpush1.bf16.xpose.msra.mxu0 0
        %668 = vmatprep.subr.bf16.mxu0 0
        %669 = vmatpush1.bf16.xpose.msra.mxu0 0
        %670 = vmatprep.subr.bf16.mxu0 0
        %671 = vmatpush1.bf16.xpose.msra.mxu0 0
        %672 = vmatprep.subr.bf16.mxu0 0
        %673 = vmatpush1.bf16.xpose.msra.mxu0 0
        %674 = vmatprep.subr.bf16.mxu0 0
        %675 = vmatpush1.bf16.xpose.msra.mxu0 0
        %676 = vmatprep.subr.bf16.mxu0 0
        %677 = vmatpush1.bf16.xpose.msra.mxu0 0
        %678 = vmatprep.subr.bf16.mxu0 0
        %679 = vmatpush1.bf16.xpose.msra.mxu0 0
        %680 = vmatprep.subr.bf16.mxu0 0
        %681 = vmatpush1.bf16.xpose.msra.mxu0 0
        %682 = vmatprep.subr.bf16.mxu0 0
        %683 = vmatpush1.bf16.xpose.msra.mxu0 0
        %684 = vmatprep.subr.bf16.mxu0 0
        %685 = vmatpush1.bf16.xpose.msra.mxu0 0
        %686 = vmatprep.subr.bf16.mxu0 0
        %687 = vmatpush1.bf16.xpose.msra.mxu0 0
        %688 = vmatprep.subr.bf16.mxu0 0
        %689 = vmatpush1.bf16.xpose.msra.mxu0 0
        %690 = vmatprep.subr.bf16.mxu0 0
        %691 = vmatpush1.bf16.xpose.msra.mxu0 0
        %692 = vmatprep.mubr.bf16.mxu0 0
        %693 = vmatmul.mubr.bf16.gmra.mrb[0].mxu0 %v657
        %v694 = vpop.f32.mrb[0].mxu0
        %v695 = vadd.f32 0.0, %v694
        %v696 = vpop.f32.mrb[0].mxu0
        %v697 = vpop.f32.mrb[0].mxu0
        %v698 = vadd.f32 0.0, %v697
        %v699 = vpop.f32.mrb[0].mxu0
        %700 = vdwg.mxu0
        %v701 = vmul.f32 %v695, 0.35355338
        %v702 = vmul.f32 %v698, 0.35355338
        %v703 = vsel %vm498, %v701, -1e+30
        %v704 = vsel %vm499, %v702, -1e+30
        %vm705 = vcmask 130048
        %v706 = vsel %vm705, %v703, -inf
        %707 = vmax.xlane.f32.xlu0 %v706
        %v708 = vpop.xlane.xlu0 %707
        %v709 = vsel %vm705, %v704, -inf
        %710 = vmax.xlane.f32.xlu0 %v709
        %v711 = vpop.xlane.xlu0 %710
        %v712 = vsub.f32 %v703, %v708
        %v713 = vsub.f32 %v704, %v711
        %v714 = vmul.f32 %v712, 1.442695
        %v715 = vpow.pop %v714
        %v716 = vmul.f32 %v713, 1.442695
        %v717 = vpow.pop %v716
        %v718 = vsel %vm705, %v715, 0.0
        %719 = vadd.xlane.f32.xlu0 %v718
        %v720 = vpop.xlane.xlu0 %719
        %v721 = vsel %vm705, %v717, 0.0
        %722 = vadd.xlane.f32.xlu0 %v721
        %v723 = vpop.xlane.xlu0 %722
        %v724 = vrcp.pop %v720
        %v725 = vrcp.pop %v723
        %v726 = vmul.f32 %v715, %v724
        %v727 = vmul.f32 %v717, %v725
        %v728 = vpack.c.bf16 %v727, %v726
        %v730 = vsel %vm705, %v728, 0
        %732 = vmatprep.subr.bf16.mxu0 0
        %733 = vmatpush1.bf16.msra.mxu0 %v659
        %734 = vmatprep.subr.bf16.mxu0 0
        %735 = vmatpush1.bf16.msra.mxu0 0
        %736 = vmatprep.subr.bf16.mxu0 0
        %737 = vmatpush1.bf16.msra.mxu0 0
        %738 = vmatprep.subr.bf16.mxu0 0
        %739 = vmatpush1.bf16.msra.mxu0 0
        %740 = vmatprep.subr.bf16.mxu0 0
        %741 = vmatpush1.bf16.msra.mxu0 0
        %742 = vmatprep.subr.bf16.mxu0 0
        %743 = vmatpush1.bf16.msra.mxu0 0
        %744 = vmatprep.subr.bf16.mxu0 0
        %745 = vmatpush1.bf16.msra.mxu0 0
        %746 = vmatprep.subr.bf16.mxu0 0
        %747 = vmatpush1.bf16.msra.mxu0 0
        %748 = vmatprep.subr.bf16.mxu0 0
        %749 = vmatpush1.bf16.msra.mxu0 0
        %750 = vmatprep.subr.bf16.mxu0 0
        %751 = vmatpush1.bf16.msra.mxu0 0
        %752 = vmatprep.subr.bf16.mxu0 0
        %753 = vmatpush1.bf16.msra.mxu0 0
        %754 = vmatprep.subr.bf16.mxu0 0
        %755 = vmatpush1.bf16.msra.mxu0 0
        %756 = vmatprep.subr.bf16.mxu0 0
        %757 = vmatpush1.bf16.msra.mxu0 0
        %758 = vmatprep.subr.bf16.mxu0 0
        %759 = vmatpush1.bf16.msra.mxu0 0
        %760 = vmatprep.subr.bf16.mxu0 0
        %761 = vmatpush1.bf16.msra.mxu0 0
        %762 = vmatprep.subr.bf16.mxu0 0
        %763 = vmatpush1.bf16.msra.mxu0 0
        %764 = vmatprep.mubr.bf16.mxu0 0
        %765 = vmatmul.mubr.bf16.gmra.mrb[0].mxu0 %v730
        %v766 = vpop.f32.mrb[0].mxu0
        %v767 = vadd.f32 0.0, %v766
        %v768 = vpop.f32.mrb[0].mxu0
        %v769 = vpop.f32.mrb[0].mxu0
        %v770 = vadd.f32 0.0, %v769
        %v771 = vpop.f32.mrb[0].mxu0
        %772 = vdwg.mxu0
        %v773 = vpack.c.bf16 %v770, %v767
        %s774 = smul.u32 %s501, 16
        %s775 = smul.addr %s774, 4
        %s776 = scalar_lea.vmem %s5, %s775
        %v777 = vld [vmem:[%s776] sm:$0xf]
        %v778 = vld [vmem:[%s776 + $0x4] sm:$0xf]
        %v779 = vld [vmem:[%s776 + $0x8] sm:$0xf]
        %v780 = vld [vmem:[%s776 + $0xc] sm:$0xf]
        %v781 = vld [vmem:[%s776 + $0x10] sm:$0xf]
        %v782 = vld [vmem:[%s776 + $0x14] sm:$0xf]
        %v783 = vld [vmem:[%s776 + $0x18] sm:$0xf]
        %v784 = vld [vmem:[%s776 + $0x1c] sm:$0xf]
        %v785 = vld [vmem:[%s776 + $0x20] sm:$0xf]
        %v786 = vld [vmem:[%s776 + $0x24] sm:$0xf]
        %v787 = vld [vmem:[%s776 + $0x28] sm:$0xf]
        %v788 = vld [vmem:[%s776 + $0x2c] sm:$0xf]
        %v789 = vld [vmem:[%s776 + $0x30] sm:$0xf]
        %v790 = vld [vmem:[%s776 + $0x34] sm:$0xf]
        %v791 = vld [vmem:[%s776 + $0x38] sm:$0xf]
        %v792 = vld [vmem:[%s776 + $0x3c] sm:$0xf]
        %v809 = vunpack.c.l.b16 %v777
        %v810 = vunpack.c.l.b16 %v778
        %v811 = vunpack.c.l.b16 %v779
        %v812 = vunpack.c.l.b16 %v780
        %v813 = vunpack.c.l.b16 %v781
        %v814 = vunpack.c.l.b16 %v782
        %v815 = vunpack.c.l.b16 %v783
        %v816 = vunpack.c.l.b16 %v784
        %v817 = vunpack.c.l.b16 %v785
        %v818 = vunpack.c.l.b16 %v786
        %v819 = vunpack.c.l.b16 %v787
        %v820 = vunpack.c.l.b16 %v788
        %v821 = vunpack.c.l.b16 %v789
        %v822 = vunpack.c.l.b16 %v790
        %v823 = vunpack.c.l.b16 %v791
        %v824 = vunpack.c.l.b16 %v792
        %v825 = vpack.c.b16 %v810, %v809
        %v826 = vpack.c.b16 %v812, %v811
        %v827 = vpack.c.b16 %v814, %v813
        %v828 = vpack.c.b16 %v816, %v815
        %v829 = vpack.c.b16 %v818, %v817
        %v830 = vpack.c.b16 %v820, %v819
        %v831 = vpack.c.b16 %v822, %v821
        %v832 = vpack.c.b16 %v824, %v823
        %841 = vmatprep.subr.bf16.mxu0 0
        %842 = vmatpush1.bf16.msra.mxu0 %v825
        %843 = vmatprep.subr.bf16.mxu0 0
        %844 = vmatpush1.bf16.msra.mxu0 %v826
        %845 = vmatprep.subr.bf16.mxu0 0
        %846 = vmatpush1.bf16.msra.mxu0 %v827
        %847 = vmatprep.subr.bf16.mxu0 0
        %848 = vmatpush1.bf16.msra.mxu0 %v828
        %849 = vmatprep.subr.bf16.mxu0 0
        %850 = vmatpush1.bf16.msra.mxu0 %v829
        %851 = vmatprep.subr.bf16.mxu0 0
        %852 = vmatpush1.bf16.msra.mxu0 %v830
        %853 = vmatprep.subr.bf16.mxu0 0
        %854 = vmatpush1.bf16.msra.mxu0 %v831
        %855 = vmatprep.subr.bf16.mxu0 0
        %856 = vmatpush1.bf16.msra.mxu0 %v832
        %857 = vmatprep.subr.bf16.mxu0 0
        %858 = vmatpush1.bf16.msra.mxu0 0
        %859 = vmatprep.subr.bf16.mxu0 0
        %860 = vmatpush1.bf16.msra.mxu0 0
        %861 = vmatprep.subr.bf16.mxu0 0
        %862 = vmatpush1.bf16.msra.mxu0 0
        %863 = vmatprep.subr.bf16.mxu0 0
        %864 = vmatpush1.bf16.msra.mxu0 0
        %865 = vmatprep.subr.bf16.mxu0 0
        %866 = vmatpush1.bf16.msra.mxu0 0
        %867 = vmatprep.subr.bf16.mxu0 0
        %868 = vmatpush1.bf16.msra.mxu0 0
        %869 = vmatprep.subr.bf16.mxu0 0
        %870 = vmatpush1.bf16.msra.mxu0 0
        %871 = vmatprep.subr.bf16.mxu0 0
        %872 = vmatpush1.bf16.msra.mxu0 0
        %873 = vmatprep.mubr.bf16.mxu0 0
        %874 = vmatmul.mubr.bf16.gmra.mrb[0].mxu0 %v773
        %v875 = vpop.f32.mrb[0].mxu0
        %v876 = vadd.f32 0.0, %v875
        %v877 = vpop.f32.mrb[0].mxu0
        %v878 = vpop.f32.mrb[0].mxu0
        %v879 = vadd.f32 0.0, %v878
        %v880 = vpop.f32.mrb[0].mxu0
        %881 = vdwg.mxu0
        %v882 = vadd.f32 %v506, %v876
        %v883 = vadd.f32 %v507, %v879
      $region77: #{transformer_forward.5} parent=71 // loop_footer
        %s505 = sadd.s32 1, %s501
      $region78: #{transformer_forward.5} parent=71 // loop_footer_branch
        %500 = sbr.rel target = $region74
      $region79: #{transformer_forward.5} parent=71 // loop_exit
        _
      %v884 = vadd.f32 %v444, %v506
      %v885 = vadd.f32 %v445, %v507
      %v886 = vld [vmem:[%s6] sm:$0x1]
      %v888 = vlaneseq
      %v889 = vshrl.u32 %v888, 7
      %v890 = vsub.s32 0, %v889
      %v891 = vrot.slane %v886, %v890
      %v893 = vadd.f32 %v884, %v891
      %v894 = vadd.f32 %v885, %v891
      %v895 = vld [vmem:[%s7] sm:$0x1]
      %v896 = vld [vmem:[%s8] sm:$0x1]
      %v897 = vsel %vm448, %v893, 0.0
      %898 = vadd.xlane.f32.xlu0 %v897
      %v899 = vpop.xlane.xlu0 %898
      %v900 = vsel %vm448, %v894, 0.0
      %901 = vadd.xlane.f32.xlu0 %v900
      %v902 = vpop.xlane.xlu0 %901
      %v903 = vmul.f32 %v899, %v455
      %v904 = vmul.f32 %v902, %v455
      %v905 = vsub.f32 %v893, %v903
      %v906 = vsub.f32 %v894, %v904
      %v907 = vmul.f32 %v905, %v905
      %v908 = vmul.f32 %v906, %v906
      %v909 = vsel %vm448, %v907, 0.0
      %910 = vadd.xlane.f32.xlu0 %v909
      %v911 = vpop.xlane.xlu0 %910
      %v912 = vsel %vm448, %v908, 0.0
      %913 = vadd.xlane.f32.xlu0 %v912
      %v914 = vpop.xlane.xlu0 %913
      %v915 = vmul.f32 %v911, %v455
      %v916 = vmul.f32 %v914, %v455
      %v917 = vadd.f32 %v915, 1e-05
      %v918 = vadd.f32 %v916, 1e-05
      %v919 = vrsqrt.pop %v917
      %v920 = vrsqrt.pop %v918
      %v921 = vmul.f32 %v905, %v919
      %v922 = vmul.f32 %v906, %v920
      %v924 = vlaneseq
      %v925 = vshrl.u32 %v924, 7
      %v926 = vsub.s32 0, %v925
      %v927 = vrot.slane %v895, %v926
      %v929 = vmul.f32 %v921, %v927
      %v930 = vmul.f32 %v922, %v927
      %v932 = vlaneseq
      %v933 = vshrl.u32 %v932, 7
      %v934 = vsub.s32 0, %v933
      %v935 = vrot.slane %v896, %v934
      %v937 = vadd.f32 %v929, %v935
      %v938 = vadd.f32 %v930, %v935
      %v939 = vpack.c.bf16 %v938, %v937
      %v940 = vld [vmem:[%s9] sm:$0xf]
      %v941 = vld [vmem:[%s9 + $0x4] sm:$0xf]
      %v942 = vld [vmem:[%s9 + $0x8] sm:$0xf]
      %v943 = vld [vmem:[%s9 + $0xc] sm:$0xf]
      %v944 = vld [vmem:[%s10] sm:$0x1]
      %v946 = vlaneseq
      %v947 = vshrl.u32 %v946, 7
      %v948 = vsub.s32 0, %v947
      %v949 = vrot.slane %v944, %v948
      %v955 = vunpack.c.l.b16 %v940
      %v956 = vunpack.c.l.b16 %v941
      %v957 = vunpack.c.l.b16 %v942
      %v958 = vunpack.c.l.b16 %v943
      %v959 = vpack.c.b16 %v956, %v955
      %v960 = vpack.c.b16 %v958, %v957
      %v964 = vsel %vm448, %v939, 0
      %966 = vmatprep.subr.bf16.mxu0 0
      %967 = vmatpush1.bf16.msra.mxu0 %v959
      %968 = vmatprep.subr.bf16.mxu0 0
      %969 = vmatpush1.bf16.msra.mxu0 %v960
      %970 = vmatprep.subr.bf16.mxu0 0
      %971 = vmatpush1.bf16.msra.mxu0 0
      %972 = vmatprep.subr.bf16.mxu0 0
      %973 = vmatpush1.bf16.msra.mxu0 0
      %974 = vmatprep.subr.bf16.mxu0 0
      %975 = vmatpush1.bf16.msra.mxu0 0
      %976 = vmatprep.subr.bf16.mxu0 0
      %977 = vmatpush1.bf16.msra.mxu0 0
      %978 = vmatprep.subr.bf16.mxu0 0
      %979 = vmatpush1.bf16.msra.mxu0 0
      %980 = vmatprep.subr.bf16.mxu0 0
      %981 = vmatpush1.bf16.msra.mxu0 0
      %982 = vmatprep.subr.bf16.mxu0 0
      %983 = vmatpush1.bf16.msra.mxu0 0
      %984 = vmatprep.subr.bf16.mxu0 0
      %985 = vmatpush1.bf16.msra.mxu0 0
      %986 = vmatprep.subr.bf16.mxu0 0
      %987 = vmatpush1.bf16.msra.mxu0 0
      %988 = vmatprep.subr.bf16.mxu0 0
      %989 = vmatpush1.bf16.msra.mxu0 0
      %990 = vmatprep.subr.bf16.mxu0 0
      %991 = vmatpush1.bf16.msra.mxu0 0
      %992 = vmatprep.subr.bf16.mxu0 0
      %993 = vmatpush1.bf16.msra.mxu0 0
      %994 = vmatprep.subr.bf16.mxu0 0
      %995 = vmatpush1.bf16.msra.mxu0 0
      %996 = vmatprep.subr.bf16.mxu0 0
      %997 = vmatpush1.bf16.msra.mxu0 0
      %998 = vmatprep.mubr.bf16.mxu0 0
      %999 = vmatmul.mubr.bf16.gmra.mrb[0].mxu0 %v964
      %v1000 = vpop.f32.mrb[0].mxu0
      %v1001 = vadd.f32 %v949, %v1000
      %v1002 = vpop.f32.mrb[0].mxu0
      %v1003 = vpop.f32.mrb[0].mxu0
      %v1004 = vadd.f32 %v949, %v1003
      %v1005 = vpop.f32.mrb[0].mxu0
      %1006 = vdwg.mxu0
      %v1007 = vmul.f32 %v1001, 0.5
      %v1008 = vmul.f32 %v1004, 0.5
      %v1009 = vmul.f32 %v1001, 0.70710677
      %v1010 = vmul.f32 %v1004, 0.70710677
      %v1011 = verf.f32.pop %v1009
      %v1012 = verf.f32.pop %v1010
      %v1013 = vadd.f32 %v1011, 1.0
      %v1014 = vadd.f32 %v1012, 1.0
      %v1015 = vmul.f32 %v1007, %v1013
      %v1016 = vmul.f32 %v1008, %v1014
      %v1017 = vpack.c.bf16 %v1016, %v1015
      %v1018 = vld [vmem:[%s11] sm:$0xf]
      %v1019 = vld [vmem:[%s11 + $0x4] sm:$0xf]
      %v1020 = vld [vmem:[%s11 + $0x8] sm:$0xf]
      %v1021 = vld [vmem:[%s11 + $0xc] sm:$0xf]
      %v1022 = vld [vmem:[%s11 + $0x10] sm:$0xf]
      %v1023 = vld [vmem:[%s11 + $0x14] sm:$0xf]
      %v1024 = vld [vmem:[%s11 + $0x18] sm:$0xf]
      %v1025 = vld [vmem:[%s11 + $0x1c] sm:$0xf]
      %v1026 = vld [vmem:[%s11 + $0x20] sm:$0xf]
      %v1027 = vld [vmem:[%s11 + $0x24] sm:$0xf]
      %v1028 = vld [vmem:[%s11 + $0x28] sm:$0xf]
      %v1029 = vld [vmem:[%s11 + $0x2c] sm:$0xf]
      %v1030 = vld [vmem:[%s11 + $0x30] sm:$0xf]
      %v1031 = vld [vmem:[%s11 + $0x34] sm:$0xf]
      %v1032 = vld [vmem:[%s11 + $0x38] sm:$0xf]
      %v1033 = vld [vmem:[%s11 + $0x3c] sm:$0xf]
      %v1050 = vunpack.c.l.b16 %v1018
      %v1051 = vunpack.c.l.b16 %v1019
      %v1052 = vunpack.c.l.b16 %v1020
      %v1053 = vunpack.c.l.b16 %v1021
      %v1054 = vunpack.c.l.b16 %v1022
      %v1055 = vunpack.c.l.b16 %v1023
      %v1056 = vunpack.c.l.b16 %v1024
      %v1057 = vunpack.c.l.b16 %v1025
      %v1058 = vunpack.c.l.b16 %v1026
      %v1059 = vunpack.c.l.b16 %v1027
      %v1060 = vunpack.c.l.b16 %v1028
      %v1061 = vunpack.c.l.b16 %v1029
      %v1062 = vunpack.c.l.b16 %v1030
      %v1063 = vunpack.c.l.b16 %v1031
      %v1064 = vunpack.c.l.b16 %v1032
      %v1065 = vunpack.c.l.b16 %v1033
      %v1066 = vpack.c.b16 %v1051, %v1050
      %v1067 = vpack.c.b16 %v1053, %v1052
      %v1068 = vpack.c.b16 %v1055, %v1054
      %v1069 = vpack.c.b16 %v1057, %v1056
      %v1070 = vpack.c.b16 %v1059, %v1058
      %v1071 = vpack.c.b16 %v1061, %v1060
      %v1072 = vpack.c.b16 %v1063, %v1062
      %v1073 = vpack.c.b16 %v1065, %v1064
      %1082 = vmatprep.subr.bf16.mxu0 0
      %1083 = vmatpush1.bf16.msra.mxu0 %v1066
      %1084 = vmatprep.subr.bf16.mxu0 0
      %1085 = vmatpush1.bf16.msra.mxu0 %v1067
      %1086 = vmatprep.subr.bf16.mxu0 0
      %1087 = vmatpush1.bf16.msra.mxu0 %v1068
      %1088 = vmatprep.subr.bf16.mxu0 0
      %1089 = vmatpush1.bf16.msra.mxu0 %v1069
      %1090 = vmatprep.subr.bf16.mxu0 0
      %1091 = vmatpush1.bf16.msra.mxu0 %v1070
      %1092 = vmatprep.subr.bf16.mxu0 0
      %1093 = vmatpush1.bf16.msra.mxu0 %v1071
      %1094 = vmatprep.subr.bf16.mxu0 0
      %1095 = vmatpush1.bf16.msra.mxu0 %v1072
      %1096 = vmatprep.subr.bf16.mxu0 0
      %1097 = vmatpush1.bf16.msra.mxu0 %v1073
      %1098 = vmatprep.subr.bf16.mxu0 0
      %1099 = vmatpush1.bf16.msra.mxu0 0
      %1100 = vmatprep.subr.bf16.mxu0 0
      %1101 = vmatpush1.bf16.msra.mxu0 0
      %1102 = vmatprep.subr.bf16.mxu0 0
      %1103 = vmatpush1.bf16.msra.mxu0 0
      %1104 = vmatprep.subr.bf16.mxu0 0
      %1105 = vmatpush1.bf16.msra.mxu0 0
      %1106 = vmatprep.subr.bf16.mxu0 0
      %1107 = vmatpush1.bf16.msra.mxu0 0
      %1108 = vmatprep.subr.bf16.mxu0 0
      %1109 = vmatpush1.bf16.msra.mxu0 0
      %1110 = vmatprep.subr.bf16.mxu0 0
      %1111 = vmatpush1.bf16.msra.mxu0 0
      %1112 = vmatprep.subr.bf16.mxu0 0
      %1113 = vmatpush1.bf16.msra.mxu0 0
      %1114 = vmatprep.mubr.bf16.mxu0 0
      %1115 = vmatmul.mubr.bf16.gmra.mrb[0].mxu0 %v1017
      %v1116 = vpop.f32.mrb[0].mxu0
      %v1117 = vadd.f32 0.0, %v1116
      %v1118 = vpop.f32.mrb[0].mxu0
      %v1119 = vpop.f32.mrb[0].mxu0
      %v1120 = vadd.f32 0.0, %v1119
      %v1121 = vpop.f32.mrb[0].mxu0
      %1122 = vdwg.mxu0
      %v1123 = vadd.f32 %v893, %v1117
      %v1124 = vadd.f32 %v894, %v1120
      %v1125 = vld [vmem:[%s12] sm:$0x1]
      %v1127 = vlaneseq
      %v1128 = vshrl.u32 %v1127, 7
      %v1129 = vsub.s32 0, %v1128
      %v1130 = vrot.slane %v1125, %v1129
      %v1132 = vadd.f32 %v1123, %v1130
      %v1133 = vadd.f32 %v1124, %v1130
      %v1134 = vpack.c.bf16 %v1133, %v1132
      %v1136 = vunpack.c.l.b16 %v1134
      %v1137 = vunpack.c.h.b16 %v1134
      %v1138 = vpack.c.b16 %v1136, %v1136
      %v1139 = vpack.c.b16 %v1137, %v1137
      %vm1142 = vcmask 257024
      %1143 = vst.msk [vmem:[%s440] sm:$0xf] %vm1142, %v1138
      %1144 = vst.msk [vmem:[%s440 + $0x4] sm:$0xf] %vm1142, %v1139
      %p1145 = scmp.lt.s32.totalorder %s24, 1
      %s1146 = scalar_select %p1145, %s24, 1
      %s1147 = smul.addr %s1146, 2
      %s1148 = smul.addr %s1147, 4
      %s1149 = scalar_lea.vmem %s13, %s1148
      // Predicated region
      $region80: #{transformer_forward.5} parent=71 // pred_check
        %p1150 = pneg %p320
      $region81: #{transformer_forward.5} parent=71 // pred_check_branch
        %1152 = sbr.rel (%p1150) target = $region83
      $region82: #{transformer_forward.5} parent=71 // pred_region
        _
      $region83: #{transformer_forward.5} parent=71 // pred_fallthru
        _
    $region72: #{transformer_forward.5} parent=5 // pred_fallthru
      _
    %p1153 = scmp.le.s32.totalorder 2, %s19
    // Predicated region
    $region84: #{transformer_forward.5} parent=5 // pred_check
      %p1154 = pneg %p1153
    $region85: #{transformer_forward.5} parent=5 // pred_check_branch
      %1156 = sbr.rel (%p1154) target = $region87
    $region86: #{transformer_forward.5} parent=5 // pred_region
      %s1157 = ssub.s32 %s19, 2
      // Predicated region
      $region88: #{transformer_forward.5} parent=86 // pred_check
        %p1158 = pneg %p326
      $region89: #{transformer_forward.5} parent=86 // pred_check_branch
        %1160 = sbr.rel (%p1158) target = $region91
      $region90: #{transformer_forward.5} parent=86 // pred_region
        %p1161 = scmp.lt.s32.totalorder %s25, 1
        %s1162 = scalar_select %p1161, %s25, 1
        %s1163 = smul.addr %s1162, 2
        %s1164 = smul.addr %s1163, 4
        %s1165 = scalar_lea.vmem %s13, %s1164
      $region91: #{transformer_forward.5} parent=86 // pred_fallthru
        _
    $region87: #{transformer_forward.5} parent=5 // pred_fallthru
      _
  $region6: #{transformer_forward.5} parent=0 // loop_footer
    %s23 = sadd.s32 1, %s19
  $region7: #{transformer_forward.5} parent=0 // loop_footer_branch
    %18 = sbr.rel target = $region3
  $region8: #{transformer_forward.5} parent=0 // loop_exit
    _

</llo_original>
